<compile_context>
chip_gen: v5e
topology: v5e:2x2
jax: 0.10.0
libtpu: 0.0.40
codegen_flags: <defaults>
</compile_context>

<pallas_src>
import functools

import jax
import jax.numpy as jnp
from jax.experimental import pallas as pl
from jax.experimental.pallas import tpu as pltpu  # noqa: F401  (TPU backend)

EMBED_DIM = 32
N_HEADS = 4


# ------------------------------- Pallas kernel -------------------------------

def _mha_kernel(q_ref, k_ref, v_ref,
                wq_ref, wk_ref, wv_ref, wo_ref,
                bq_ref, bk_ref, bv_ref, bo_ref,
                out_ref, attnw_ref,
                *, B, nh, hd):
    # y^T = W @ x^T: contract the "in" dim of W (dim 1, PyTorch (out,in) layout)
    # with the E dim of x (dim 1).  Result is (E_out, rows) => heads land on the
    # sublane axis and the per-head split below is a free reshape (no lane
    # slicing, no relayout).
    dn_wx = (((1,), (1,)), ((), ()))
    # Head-batched attention matmuls (batch dim 0 == heads):
    dn_qk = (((2,), (1,)), ((0,), (0,)))   # (nh,T,hd) x (nh,hd,S) -> (nh,T,S)
    dn_av = (((2,), (2,)), ((0,), (0,)))   # (nh,T,S)  x (nh,hd,S) -> (nh,T,hd)
    dn_co = (((2,), (1,)), ((0,), (0,)))   # (nh,T,hd) x (nh,hd,E) -> (nh,T,E)
    f32 = jnp.float32

    wq = wq_ref[...]; wk = wk_ref[...]; wv = wv_ref[...]; wo = wo_ref[...]
    bq = bq_ref[...]; bk = bk_ref[...]; bv = bv_ref[...]; bo = bo_ref[...]

    for b in range(B):                     # B is tiny: fully unrolled, no grid
        xq = q_ref[b]                      # (T, E) free leading-dim slice
        xk = k_ref[b]                      # (S, E)
        xv = v_ref[b]                      # (S, E)
        T = xq.shape[0]
        S = xk.shape[0]

        # Projections (wq/bq carry the 1/sqrt(hd) scaling, folded at init).
        qh = (jax.lax.dot_general(wq, xq, dn_wx, preferred_element_type=f32)
              + bq).reshape(nh, hd, T)
        kh = (jax.lax.dot_general(wk, xk, dn_wx, preferred_element_type=f32)
              + bk).reshape(nh, hd, S)
        vh = (jax.lax.dot_general(wv, xv, dn_wx, preferred_element_type=f32)
              + bv).reshape(nh, hd, S)
        qt = jnp.swapaxes(qh, 1, 2)        # (nh, T, hd): one cheap minor-dims transpose

        # Scores + softmax for all heads of this batch at once.
        s = jax.lax.dot_general(qt, kh, dn_qk, preferred_element_type=f32)
        m = jnp.max(s, axis=-1, keepdims=True)
        p = jnp.exp(s - m)
        a = p / jnp.sum(p, axis=-1, keepdims=True)   # exact: rows sum to 1
        # TODO(synk): attention-weight dropout (p=0.1) is identity at inference.
        attnw_ref[b] = a                   # all heads of batch b in ONE store

        # Context + output projection; summing over the untiled head axis
        # replaces the old ctx VMEM scratch (no masked narrow stores).
        ctx = jax.lax.dot_general(a, vh, dn_av, preferred_element_type=f32)
        oh = jax.lax.dot_general(ctx, wo, dn_co, preferred_element_type=f32)
        out_ref[b] = (jnp.sum(oh, axis=0) + bo).astype(out_ref.dtype)


# --------------------------- Parameter preparation ---------------------------

def prepare_params(in_w, in_b, out_w, out_b, num_heads=N_HEADS):
    """One-time (model-init) parameter prep so the per-call path does no weight
    math: split in_proj into q/k/v, fold the 1/sqrt(head_dim) scaling into the
    Q projection, pre-slice the output projection per head, reshape biases."""
    E = out_w.shape[0]
    assert E % num_heads == 0
    hd = E // num_heads
    scaling = float(hd) ** (-0.5)
    wq = (in_w[:E] * scaling).astype(jnp.float32)               # (E, E)
    wk = in_w[E:2 * E].astype(jnp.float32)                      # (E, E)
    wv = in_w[2 * E:].astype(jnp.float32)                       # (E, E)
    bq = (in_b[:E] * scaling).reshape(E, 1).astype(jnp.float32)
    bk = in_b[E:2 * E].reshape(E, 1).astype(jnp.float32)
    bv = in_b[2 * E:].reshape(E, 1).astype(jnp.float32)
    wo_h = out_w.T.reshape(num_heads, hd, E).astype(jnp.float32)  # (nh, hd, E)
    bo = out_b.reshape(1, E).astype(jnp.float32)
    return (wq, wk, wv, wo_h, bq, bk, bv, bo)


# --------------------------------- Wrapper -----------------------------------

@functools.partial(jax.jit, static_argnames=("num_heads",))
def multihead_atten(query, key, value, params, *, num_heads=N_HEADS):
    """MultiheadAtten.forward (attn_mask=None, key_padding_mask=None, inference).

    query: (T, B, E); key/value: (S, B, E); params from prepare_params().
    Returns (attn_output (T, B, E), attn_weights (B, num_heads, T, S)).
    """
    T, B, E = query.shape
    S = key.shape[0]
    hd = E // num_heads
    wq, wk, wv, wo_h, bq, bk, bv, bo = params

    # Only per-call layout ops: batch-major views so the kernel indexes each
    # batch with a free leading-dim slice (no sublane-crossing slices inside),
    # plus the (B,T,E)->(T,B,E) transpose of the result demanded by the API.
    qb = query.transpose(1, 0, 2)      # (B, T, E)
    kb = key.transpose(1, 0, 2)        # (B, S, E)
    vb = value.transpose(1, 0, 2)      # (B, S, E)

    # TODO(synk): for real TTS sequence lengths add a ("parallel", ...) grid
    # over (B*nh) / query tiles so the attention weights are not fully
    # VMEM-resident (v7x has only 64 MiB VMEM / 32 MiB scoped default).
    out_bte, attn_w = pl.pallas_call(
        functools.partial(_mha_kernel, B=B, nh=num_heads, hd=hd),
        out_shape=(
            jax.ShapeDtypeStruct((B, T, E), query.dtype),
            jax.ShapeDtypeStruct((B, num_heads, T, S), jnp.float32),
        ),
    )(qb, kb, vb, wq, wk, wv, wo_h, bq, bk, bv, bo)

    return out_bte.transpose(1, 0, 2), attn_w


# ---------------------------- Pure-JAX reference -----------------------------

def mha_reference(query, key, value, in_w, in_b, out_w, out_b,
                  num_heads=N_HEADS):
    T, B, E = query.shape
    S = key.shape[0]
    hd = E // num_heads
    scaling = float(hd) ** (-0.5)
    q = query @ in_w[:E].T + in_b[:E]
    k = key @ in_w[E:2 * E].T + in_b[E:2 * E]
    v = value @ in_w[2 * E:].T + in_b[2 * E:]
    q = q * scaling
    q = q.reshape(T, B * num_heads, hd).transpose(1, 0, 2)
    k = k.reshape(S, B * num_heads, hd).transpose(1, 0, 2)
    v = v.reshape(S, B * num_heads, hd).transpose(1, 0, 2)
    s = jnp.einsum("btd,bsd->bts", q, k)
    w = jax.nn.softmax(s, axis=-1)
    o = jnp.einsum("bts,bsd->btd", w, v)
    o = o.transpose(1, 0, 2).reshape(T, B, E)
    o = o @ out_w.T + out_b
    return o, w.reshape(B, num_heads, T, S)


# --------------------------- Parameter construction --------------------------

def make_params(key, embed_dim=EMBED_DIM):
    k1, k2, k3, k4 = jax.random.split(key, 4)
    # nn.init.xavier_uniform_ on (3E, E)
    fan_out, fan_in = 3 * embed_dim, embed_dim
    a = (6.0 / (fan_in + fan_out)) ** 0.5
    in_w = jax.random.uniform(k1, (3 * embed_dim, embed_dim), jnp.float32, -a, a)
    # nn.init.kaiming_uniform_(a=sqrt(5)) on (E, E): bound = 1/sqrt(fan_in)
    bound = 1.0 / (embed_dim ** 0.5)
    out_w = jax.random.uniform(k2, (embed_dim, embed_dim), jnp.float32,
                               -bound, bound)
    # Module inits biases to 0; use small non-zero biases so the kernel's bias
    # path is actually exercised by the numeric check.
    in_b = 0.05 * jax.random.normal(k3, (3 * embed_dim,), jnp.float32)
    out_b = 0.05 * jax.random.normal(k4, (embed_dim,), jnp.float32)
    return in_w, in_b, out_w, out_b


# ------------------------------------ Main ------------------------------------

if __name__ == "__main__":
    key = jax.random.PRNGKey(0)
    k_w, k_q, k_m = jax.random.split(key, 3)

    T, S, B, E = 8, 10, 2, EMBED_DIM
    in_w, in_b, out_w, out_b = make_params(k_w, E)
    params = prepare_params(in_w, in_b, out_w, out_b, num_heads=N_HEADS)  # once, at init

    query = jax.random.normal(k_q, (T, B, E), jnp.float32)
    memory = jax.random.normal(k_m, (S, B, E), jnp.float32)

    # Self-attention (query == key == value) and cross-attention (key == value).
    out_self, w_self = multihead_atten(query, query, query, params,
                                       num_heads=N_HEADS)
    out_cross, w_cross = multihead_atten(query, memory, memory, params,
                                         num_heads=N_HEADS)
    jax.block_until_ready((out_self, w_self, out_cross, w_cross))

    assert out_self.shape == (T, B, E)
    assert w_self.shape == (B, N_HEADS, T, T)
    assert out_cross.shape == (T, B, E)
    assert w_cross.shape == (B, N_HEADS, T, S)

    # Numerical check against a pure-JAX reference (exact softmax now).
    ref_o, ref_w = mha_reference(query, query, query, in_w, in_b, out_w, out_b)
    assert jnp.allclose(out_self, ref_o, rtol=1e-3, atol=1e-3)
    assert jnp.allclose(w_self, ref_w, rtol=1e-3, atol=1e-3)
    assert jnp.allclose(w_self.sum(-1), 1.0, atol=1e-4)  # rows sum to 1

    ref_o2, ref_w2 = mha_reference(query, memory, memory, in_w, in_b, out_w, out_b)
    assert jnp.allclose(out_cross, ref_o2, rtol=1e-3, atol=1e-3)
    assert jnp.allclose(w_cross, ref_w2, rtol=1e-3, atol=1e-3)
    assert jnp.allclose(w_cross.sum(-1), 1.0, atol=1e-4)

    print("KERNEL_OK")
</pallas_src>

<mosaic_0001>
module attributes {stable_mosaic.version = 11 : i64} {
  func.func @_mha_kernel(%arg0: memref<2x8x32xf32, #tpu.memory_space<vmem>>, %arg1: memref<2x8x32xf32, #tpu.memory_space<vmem>>, %arg2: memref<2x8x32xf32, #tpu.memory_space<vmem>>, %arg3: memref<32x32xf32, #tpu.memory_space<vmem>>, %arg4: memref<32x32xf32, #tpu.memory_space<vmem>>, %arg5: memref<32x32xf32, #tpu.memory_space<vmem>>, %arg6: memref<4x8x32xf32, #tpu.memory_space<vmem>>, %arg7: memref<32x1xf32, #tpu.memory_space<vmem>>, %arg8: memref<32x1xf32, #tpu.memory_space<vmem>>, %arg9: memref<32x1xf32, #tpu.memory_space<vmem>>, %arg10: memref<1x32xf32, #tpu.memory_space<vmem>>, %arg11: memref<2x8x32xf32, #tpu.memory_space<vmem>>, %arg12: memref<2x4x8x8xf32, #tpu.memory_space<vmem>>) attributes {dimension_semantics = [], scalar_prefetch = 0 : i64, scratch_operands = 0 : i64, tpu.core_type = #tpu.core_type<tc>} {
    %c0 = arith.constant 0 : index
    %c0_0 = arith.constant 0 : index
    %0 = vector.load %arg3[%c0, %c0_0] : memref<32x32xf32, #tpu.memory_space<vmem>>, vector<32x32xf32>
    %c0_1 = arith.constant 0 : index
    %c0_2 = arith.constant 0 : index
    %1 = vector.load %arg4[%c0_1, %c0_2] : memref<32x32xf32, #tpu.memory_space<vmem>>, vector<32x32xf32>
    %c0_3 = arith.constant 0 : index
    %c0_4 = arith.constant 0 : index
    %2 = vector.load %arg5[%c0_3, %c0_4] : memref<32x32xf32, #tpu.memory_space<vmem>>, vector<32x32xf32>
    %c0_5 = arith.constant 0 : index
    %c0_6 = arith.constant 0 : index
    %c0_7 = arith.constant 0 : index
    %3 = vector.load %arg6[%c0_5, %c0_6, %c0_7] : memref<4x8x32xf32, #tpu.memory_space<vmem>>, vector<4x8x32xf32>
    %c0_8 = arith.constant 0 : index
    %c0_9 = arith.constant 0 : index
    %4 = vector.load %arg7[%c0_8, %c0_9] : memref<32x1xf32, #tpu.memory_space<vmem>>, vector<32x1xf32>
    %c0_10 = arith.constant 0 : index
    %c0_11 = arith.constant 0 : index
    %5 = vector.load %arg8[%c0_10, %c0_11] : memref<32x1xf32, #tpu.memory_space<vmem>>, vector<32x1xf32>
    %c0_12 = arith.constant 0 : index
    %c0_13 = arith.constant 0 : index
    %6 = vector.load %arg9[%c0_12, %c0_13] : memref<32x1xf32, #tpu.memory_space<vmem>>, vector<32x1xf32>
    %c0_14 = arith.constant 0 : index
    %c0_15 = arith.constant 0 : index
    %7 = vector.load %arg10[%c0_14, %c0_15] : memref<1x32xf32, #tpu.memory_space<vmem>>, vector<1x32xf32>
    %c0_16 = arith.constant 0 : index
    %c0_17 = arith.constant 0 : index
    %c0_18 = arith.constant 0 : index
    %8 = vector.load %arg0[%c0_16, %c0_17, %c0_18] : memref<2x8x32xf32, #tpu.memory_space<vmem>>, vector<1x8x32xf32>
    %9 = vector.shape_cast %8 : vector<1x8x32xf32> to vector<8x32xf32>
    %c0_19 = arith.constant 0 : index
    %c0_20 = arith.constant 0 : index
    %c0_21 = arith.constant 0 : index
    %10 = vector.load %arg1[%c0_19, %c0_20, %c0_21] : memref<2x8x32xf32, #tpu.memory_space<vmem>>, vector<1x8x32xf32>
    %11 = vector.shape_cast %10 : vector<1x8x32xf32> to vector<8x32xf32>
    %c0_22 = arith.constant 0 : index
    %c0_23 = arith.constant 0 : index
    %c0_24 = arith.constant 0 : index
    %12 = vector.load %arg2[%c0_22, %c0_23, %c0_24] : memref<2x8x32xf32, #tpu.memory_space<vmem>>, vector<1x8x32xf32>
    %13 = vector.shape_cast %12 : vector<1x8x32xf32> to vector<8x32xf32>
    %cst = arith.constant dense<0.000000e+00> : vector<32x8xf32>
    %14 = tpu.matmul %0, %9, %cst {dimension_numbers = #tpu.dot_dimension_numbers<[1], [1], [0], [0], [0, 0, 1, 0], [], []>} : vector<32x32xf32>, vector<8x32xf32>, vector<32x8xf32> -> vector<32x8xf32>
    %15 = vector.broadcast %4 : vector<32x1xf32> to vector<32x8xf32>
    %16 = arith.addf %14, %15 : vector<32x8xf32>
    %17 = vector.shape_cast %16 : vector<32x8xf32> to vector<4x8x8xf32>
    %cst_25 = arith.constant dense<0.000000e+00> : vector<32x8xf32>
    %18 = tpu.matmul %1, %11, %cst_25 {dimension_numbers = #tpu.dot_dimension_numbers<[1], [1], [0], [0], [0, 0, 1, 0], [], []>} : vector<32x32xf32>, vector<8x32xf32>, vector<32x8xf32> -> vector<32x8xf32>
    %19 = vector.broadcast %5 : vector<32x1xf32> to vector<32x8xf32>
    %20 = arith.addf %18, %19 : vector<32x8xf32>
    %21 = vector.shape_cast %20 : vector<32x8xf32> to vector<4x8x8xf32>
    %cst_26 = arith.constant dense<0.000000e+00> : vector<32x8xf32>
    %22 = tpu.matmul %2, %13, %cst_26 {dimension_numbers = #tpu.dot_dimension_numbers<[1], [1], [0], [0], [0, 0, 1, 0], [], []>} : vector<32x32xf32>, vector<8x32xf32>, vector<32x8xf32> -> vector<32x8xf32>
    %23 = vector.broadcast %6 : vector<32x1xf32> to vector<32x8xf32>
    %24 = arith.addf %22, %23 : vector<32x8xf32>
    %25 = vector.shape_cast %24 : vector<32x8xf32> to vector<4x8x8xf32>
    %26 = tpu.transpose %17, [0, 2, 1] : vector<4x8x8xf32> -> vector<4x8x8xf32>
    %cst_27 = arith.constant dense<0.000000e+00> : vector<4x8x8xf32>
    %27 = tpu.matmul %26, %21, %cst_27 {dimension_numbers = #tpu.dot_dimension_numbers<[2], [1], [1], [2], [0, 0, 0, 1, 1, 2], [0], [0]>} : vector<4x8x8xf32>, vector<4x8x8xf32>, vector<4x8x8xf32> -> vector<4x8x8xf32>
    %cst_28 = arith.constant dense<0xFF800000> : vector<4x8xf32>
    %28 = vector.multi_reduction <maximumf>, %27, %cst_28 [2] : vector<4x8x8xf32> to vector<4x8xf32>
    %29 = vector.shape_cast %28 : vector<4x8xf32> to vector<4x8x1xf32>
    %30 = vector.broadcast %29 : vector<4x8x1xf32> to vector<4x8x8xf32>
    %31 = arith.subf %27, %30 : vector<4x8x8xf32>
    %32 = math.exp %31 : vector<4x8x8xf32>
    %cst_29 = arith.constant dense<0.000000e+00> : vector<4x8xf32>
    %33 = vector.multi_reduction <add>, %32, %cst_29 [2] : vector<4x8x8xf32> to vector<4x8xf32>
    %34 = vector.shape_cast %33 : vector<4x8xf32> to vector<4x8x1xf32>
    %35 = vector.broadcast %34 : vector<4x8x1xf32> to vector<4x8x8xf32>
    %36 = arith.divf %32, %35 : vector<4x8x8xf32>
    %c0_30 = arith.constant 0 : index
    %c0_31 = arith.constant 0 : index
    %c0_32 = arith.constant 0 : index
    %c0_33 = arith.constant 0 : index
    %37 = vector.load %arg12[%c0_30, %c0_31, %c0_32, %c0_33] : memref<2x4x8x8xf32, #tpu.memory_space<vmem>>, vector<1x4x8x8xf32>
    %38 = vector.shape_cast %37 : vector<1x4x8x8xf32> to vector<4x8x8xf32>
    %39 = vector.shape_cast %36 : vector<4x8x8xf32> to vector<1x4x8x8xf32>
    tpu.vector_store %arg12[%c0_30, %c0_31, %c0_32, %c0_33], %39 {strides = array<i32>} : memref<2x4x8x8xf32, #tpu.memory_space<vmem>>, vector<1x4x8x8xf32>,
    %cst_34 = arith.constant dense<0.000000e+00> : vector<4x8x8xf32>
    %40 = tpu.matmul %36, %25, %cst_34 {dimension_numbers = #tpu.dot_dimension_numbers<[2], [2], [1], [1], [0, 0, 0, 1, 1, 1], [0], [0]>} : vector<4x8x8xf32>, vector<4x8x8xf32>, vector<4x8x8xf32> -> vector<4x8x8xf32>
    %cst_35 = arith.constant dense<0.000000e+00> : vector<4x8x32xf32>
    %41 = tpu.matmul %40, %3, %cst_35 {dimension_numbers = #tpu.dot_dimension_numbers<[2], [1], [1], [2], [0, 0, 0, 1, 1, 2], [0], [0]>} : vector<4x8x8xf32>, vector<4x8x32xf32>, vector<4x8x32xf32> -> vector<4x8x32xf32>
    %cst_36 = arith.constant dense<0.000000e+00> : vector<8x32xf32>
    %42 = vector.multi_reduction <add>, %41, %cst_36 [0] : vector<4x8x32xf32> to vector<8x32xf32>
    %43 = vector.broadcast %7 : vector<1x32xf32> to vector<8x32xf32>
    %44 = arith.addf %42, %43 : vector<8x32xf32>
    %c0_37 = arith.constant 0 : index
    %c0_38 = arith.constant 0 : index
    %c0_39 = arith.constant 0 : index
    %45 = vector.load %arg11[%c0_37, %c0_38, %c0_39] : memref<2x8x32xf32, #tpu.memory_space<vmem>>, vector<1x8x32xf32>
    %46 = vector.shape_cast %45 : vector<1x8x32xf32> to vector<8x32xf32>
    %47 = vector.shape_cast %44 : vector<8x32xf32> to vector<1x8x32xf32>
    tpu.vector_store %arg11[%c0_37, %c0_38, %c0_39], %47 {strides = array<i32>} : memref<2x8x32xf32, #tpu.memory_space<vmem>>, vector<1x8x32xf32>,
    %c1 = arith.constant 1 : index
    %c0_40 = arith.constant 0 : index
    %c0_41 = arith.constant 0 : index
    %48 = vector.load %arg0[%c1, %c0_40, %c0_41] : memref<2x8x32xf32, #tpu.memory_space<vmem>>, vector<1x8x32xf32>
    %49 = vector.shape_cast %48 : vector<1x8x32xf32> to vector<8x32xf32>
    %c1_42 = arith.constant 1 : index
    %c0_43 = arith.constant 0 : index
    %c0_44 = arith.constant 0 : index
    %50 = vector.load %arg1[%c1_42, %c0_43, %c0_44] : memref<2x8x32xf32, #tpu.memory_space<vmem>>, vector<1x8x32xf32>
    %51 = vector.shape_cast %50 : vector<1x8x32xf32> to vector<8x32xf32>
    %c1_45 = arith.constant 1 : index
    %c0_46 = arith.constant 0 : index
    %c0_47 = arith.constant 0 : index
    %52 = vector.load %arg2[%c1_45, %c0_46, %c0_47] : memref<2x8x32xf32, #tpu.memory_space<vmem>>, vector<1x8x32xf32>
    %53 = vector.shape_cast %52 : vector<1x8x32xf32> to vector<8x32xf32>
    %cst_48 = arith.constant dense<0.000000e+00> : vector<32x8xf32>
    %54 = tpu.matmul %0, %49, %cst_48 {dimension_numbers = #tpu.dot_dimension_numbers<[1], [1], [0], [0], [0, 0, 1, 0], [], []>} : vector<32x32xf32>, vector<8x32xf32>, vector<32x8xf32> -> vector<32x8xf32>
    %55 = vector.broadcast %4 : vector<32x1xf32> to vector<32x8xf32>
    %56 = arith.addf %54, %55 : vector<32x8xf32>
    %57 = vector.shape_cast %56 : vector<32x8xf32> to vector<4x8x8xf32>
    %cst_49 = arith.constant dense<0.000000e+00> : vector<32x8xf32>
    %58 = tpu.matmul %1, %51, %cst_49 {dimension_numbers = #tpu.dot_dimension_numbers<[1], [1], [0], [0], [0, 0, 1, 0], [], []>} : vector<32x32xf32>, vector<8x32xf32>, vector<32x8xf32> -> vector<32x8xf32>
    %59 = vector.broadcast %5 : vector<32x1xf32> to vector<32x8xf32>
    %60 = arith.addf %58, %59 : vector<32x8xf32>
    %61 = vector.shape_cast %60 : vector<32x8xf32> to vector<4x8x8xf32>
    %cst_50 = arith.constant dense<0.000000e+00> : vector<32x8xf32>
    %62 = tpu.matmul %2, %53, %cst_50 {dimension_numbers = #tpu.dot_dimension_numbers<[1], [1], [0], [0], [0, 0, 1, 0], [], []>} : vector<32x32xf32>, vector<8x32xf32>, vector<32x8xf32> -> vector<32x8xf32>
    %63 = vector.broadcast %6 : vector<32x1xf32> to vector<32x8xf32>
    %64 = arith.addf %62, %63 : vector<32x8xf32>
    %65 = vector.shape_cast %64 : vector<32x8xf32> to vector<4x8x8xf32>
    %66 = tpu.transpose %57, [0, 2, 1] : vector<4x8x8xf32> -> vector<4x8x8xf32>
    %cst_51 = arith.constant dense<0.000000e+00> : vector<4x8x8xf32>
    %67 = tpu.matmul %66, %61, %cst_51 {dimension_numbers = #tpu.dot_dimension_numbers<[2], [1], [1], [2], [0, 0, 0, 1, 1, 2], [0], [0]>} : vector<4x8x8xf32>, vector<4x8x8xf32>, vector<4x8x8xf32> -> vector<4x8x8xf32>
    %cst_52 = arith.constant dense<0xFF800000> : vector<4x8xf32>
    %68 = vector.multi_reduction <maximumf>, %67, %cst_52 [2] : vector<4x8x8xf32> to vector<4x8xf32>
    %69 = vector.shape_cast %68 : vector<4x8xf32> to vector<4x8x1xf32>
    %70 = vector.broadcast %69 : vector<4x8x1xf32> to vector<4x8x8xf32>
    %71 = arith.subf %67, %70 : vector<4x8x8xf32>
    %72 = math.exp %71 : vector<4x8x8xf32>
    %cst_53 = arith.constant dense<0.000000e+00> : vector<4x8xf32>
    %73 = vector.multi_reduction <add>, %72, %cst_53 [2] : vector<4x8x8xf32> to vector<4x8xf32>
    %74 = vector.shape_cast %73 : vector<4x8xf32> to vector<4x8x1xf32>
    %75 = vector.broadcast %74 : vector<4x8x1xf32> to vector<4x8x8xf32>
    %76 = arith.divf %72, %75 : vector<4x8x8xf32>
    %c1_54 = arith.constant 1 : index
    %c0_55 = arith.constant 0 : index
    %c0_56 = arith.constant 0 : index
    %c0_57 = arith.constant 0 : index
    %77 = vector.load %arg12[%c1_54, %c0_55, %c0_56, %c0_57] : memref<2x4x8x8xf32, #tpu.memory_space<vmem>>, vector<1x4x8x8xf32>
    %78 = vector.shape_cast %77 : vector<1x4x8x8xf32> to vector<4x8x8xf32>
    %79 = vector.shape_cast %76 : vector<4x8x8xf32> to vector<1x4x8x8xf32>
    tpu.vector_store %arg12[%c1_54, %c0_55, %c0_56, %c0_57], %79 {strides = array<i32>} : memref<2x4x8x8xf32, #tpu.memory_space<vmem>>, vector<1x4x8x8xf32>,
    %cst_58 = arith.constant dense<0.000000e+00> : vector<4x8x8xf32>
    %80 = tpu.matmul %76, %65, %cst_58 {dimension_numbers = #tpu.dot_dimension_numbers<[2], [2], [1], [1], [0, 0, 0, 1, 1, 1], [0], [0]>} : vector<4x8x8xf32>, vector<4x8x8xf32>, vector<4x8x8xf32> -> vector<4x8x8xf32>
    %cst_59 = arith.constant dense<0.000000e+00> : vector<4x8x32xf32>
    %81 = tpu.matmul %80, %3, %cst_59 {dimension_numbers = #tpu.dot_dimension_numbers<[2], [1], [1], [2], [0, 0, 0, 1, 1, 2], [0], [0]>} : vector<4x8x8xf32>, vector<4x8x32xf32>, vector<4x8x32xf32> -> vector<4x8x32xf32>
    %cst_60 = arith.constant dense<0.000000e+00> : vector<8x32xf32>
    %82 = vector.multi_reduction <add>, %81, %cst_60 [0] : vector<4x8x32xf32> to vector<8x32xf32>
    %83 = vector.broadcast %7 : vector<1x32xf32> to vector<8x32xf32>
    %84 = arith.addf %82, %83 : vector<8x32xf32>
    %c1_61 = arith.constant 1 : index
    %c0_62 = arith.constant 0 : index
    %c0_63 = arith.constant 0 : index
    %85 = vector.load %arg11[%c1_61, %c0_62, %c0_63] : memref<2x8x32xf32, #tpu.memory_space<vmem>>, vector<1x8x32xf32>
    %86 = vector.shape_cast %85 : vector<1x8x32xf32> to vector<8x32xf32>
    %87 = vector.shape_cast %84 : vector<8x32xf32> to vector<1x8x32xf32>
    tpu.vector_store %arg11[%c1_61, %c0_62, %c0_63], %87 {strides = array<i32>} : memref<2x8x32xf32, #tpu.memory_space<vmem>>, vector<1x8x32xf32>,
    return
  }
}

</mosaic_0001>

<llo_original>
// kernel: multihead_atten.1
$region0: #{multihead_atten.1}
  #allocation0 [shape = 'u32[]', space=smem, size = 0x4, offset = 0x4, fixed_abs, tag = 'smem constant byte address 0x4 - core index']
  #allocation1 [shape = 'u32[72,128]{1,0:T(1,128)}', space=vmem, size = 0x9000, scoped, tag = 'internal scratch']
  %s0 = inlined_call_operand.vmem [shape: f32[2,8,32], index: 0, kind: input, shape index: {}]
  %s1 = inlined_call_operand.vmem [shape: f32[2,8,32], index: 1, kind: input, shape index: {}]
  %s2 = inlined_call_operand.vmem [shape: f32[2,8,32], index: 2, kind: input, shape index: {}]
  %s3 = inlined_call_operand.vmem [shape: f32[32,32], index: 3, kind: input, shape index: {}]
  %s4 = inlined_call_operand.vmem [shape: f32[32,32], index: 4, kind: input, shape index: {}]
  %s5 = inlined_call_operand.vmem [shape: f32[32,32], index: 5, kind: input, shape index: {}]
  %s6 = inlined_call_operand.vmem [shape: f32[4,8,32], index: 6, kind: input, shape index: {}]
  %s7 = inlined_call_operand.vmem [shape: f32[32,1], index: 7, kind: input, shape index: {}]
  %s8 = inlined_call_operand.vmem [shape: f32[32,1], index: 8, kind: input, shape index: {}]
  %s9 = inlined_call_operand.vmem [shape: f32[32,1], index: 9, kind: input, shape index: {}]
  %s10 = inlined_call_operand.vmem [shape: f32[1,32], index: 10, kind: input, shape index: {}]
  %s11 = inlined_call_operand.vmem [shape: f32[2,8,32], index: 11, kind: output, shape index: {0}]
  %s12 = inlined_call_operand.hbm [shape: f32[2,4,8,8], index: 12, kind: output, shape index: {1}]
  %13 = xla_tuple %s11, %s12
  %s14 = sld [smem:[#allocation0]]
  $region62: #{multihead_atten.1} parent=0
    _
  %s16 = ssub.s32 1, %s14
  %s17 = scalar_select 0, %s16, %s14
  $region1: #{multihead_atten.1} parent=0
    #allocation2 [shape = 'u8[32768]{0}', space=vmem, size = 0x8000, scoped, tag = 'output window, operand 1, single buffered']
    #allocation3 [shape = 's32[1]{0}', space=sflag, size = 0x4, scoped, tag = 'scoped memory for multihead_atten.1']
    %18 = vsyncpa [#allocation3], 0
    // Predicated region
    $region2: #{multihead_atten.1} parent=1 // pred_check
      _
    $region3: #{multihead_atten.1} parent=1 // pred_check_branch
      %20 = sbr.rel (0) target = $region5
    $region4: #{multihead_atten.1} parent=1 // pred_region
      _
    $region5: #{multihead_atten.1} parent=1 // pred_fallthru
      _
    // Predicated region
    $region6: #{multihead_atten.1} parent=1 // pred_check
      _
    $region7: #{multihead_atten.1} parent=1 // pred_check_branch
      %22 = sbr.rel (0) target = $region9
    $region8: #{multihead_atten.1} parent=1 // pred_region
      _
    $region9: #{multihead_atten.1} parent=1 // pred_fallthru
      _
    // Predicated region
    $region10: #{multihead_atten.1} parent=1 // pred_check
      _
    $region11: #{multihead_atten.1} parent=1 // pred_check_branch
      %24 = sbr.rel (0) target = $region13
    $region12: #{multihead_atten.1} parent=1 // pred_region
      _
    $region13: #{multihead_atten.1} parent=1 // pred_fallthru
      _
    // Predicated region
    $region14: #{multihead_atten.1} parent=1 // pred_check
      _
    $region15: #{multihead_atten.1} parent=1 // pred_check_branch
      %26 = sbr.rel (0) target = $region17
    $region16: #{multihead_atten.1} parent=1 // pred_region
      _
    $region17: #{multihead_atten.1} parent=1 // pred_fallthru
      _
    // Predicated region
    $region18: #{multihead_atten.1} parent=1 // pred_check
      _
    $region19: #{multihead_atten.1} parent=1 // pred_check_branch
      %28 = sbr.rel (0) target = $region21
    $region20: #{multihead_atten.1} parent=1 // pred_region
      _
    $region21: #{multihead_atten.1} parent=1 // pred_fallthru
      _
    // Predicated region
    $region22: #{multihead_atten.1} parent=1 // pred_check
      _
    $region23: #{multihead_atten.1} parent=1 // pred_check_branch
      %30 = sbr.rel (0) target = $region25
    $region24: #{multihead_atten.1} parent=1 // pred_region
      _
    $region25: #{multihead_atten.1} parent=1 // pred_fallthru
      _
    // Predicated region
    $region26: #{multihead_atten.1} parent=1 // pred_check
      _
    $region27: #{multihead_atten.1} parent=1 // pred_check_branch
      %32 = sbr.rel (0) target = $region29
    $region28: #{multihead_atten.1} parent=1 // pred_region
      _
    $region29: #{multihead_atten.1} parent=1 // pred_fallthru
      _
    // Predicated region
    $region30: #{multihead_atten.1} parent=1 // pred_check
      _
    $region31: #{multihead_atten.1} parent=1 // pred_check_branch
      %34 = sbr.rel (0) target = $region33
    $region32: #{multihead_atten.1} parent=1 // pred_region
      _
    $region33: #{multihead_atten.1} parent=1 // pred_fallthru
      _
    // Predicated region
    $region34: #{multihead_atten.1} parent=1 // pred_check
      _
    $region35: #{multihead_atten.1} parent=1 // pred_check_branch
      %36 = sbr.rel (0) target = $region37
    $region36: #{multihead_atten.1} parent=1 // pred_region
      _
    $region37: #{multihead_atten.1} parent=1 // pred_fallthru
      _
    // Predicated region
    $region38: #{multihead_atten.1} parent=1 // pred_check
      _
    $region39: #{multihead_atten.1} parent=1 // pred_check_branch
      %38 = sbr.rel (0) target = $region41
    $region40: #{multihead_atten.1} parent=1 // pred_region
      _
    $region41: #{multihead_atten.1} parent=1 // pred_fallthru
      _
    // Predicated region
    $region42: #{multihead_atten.1} parent=1 // pred_check
      _
    $region43: #{multihead_atten.1} parent=1 // pred_check_branch
      %40 = sbr.rel (0) target = $region45
    $region44: #{multihead_atten.1} parent=1 // pred_region
      _
    $region45: #{multihead_atten.1} parent=1 // pred_fallthru
      _
    %v41 = vld [vmem:[%s3] sm:$0xff]
    %v42 = vld [vmem:[%s3 + $0x8] sm:$0xff]
    %v43 = vld [vmem:[%s3 + $0x10] sm:$0xff]
    %v44 = vld [vmem:[%s3 + $0x18] sm:$0xff]
    %v45 = vld [vmem:[%s4] sm:$0xff]
    %v46 = vld [vmem:[%s4 + $0x8] sm:$0xff]
    %v47 = vld [vmem:[%s4 + $0x10] sm:$0xff]
    %v48 = vld [vmem:[%s4 + $0x18] sm:$0xff]
    %v49 = vld [vmem:[%s5] sm:$0xff]
    %v50 = vld [vmem:[%s5 + $0x8] sm:$0xff]
    %v51 = vld [vmem:[%s5 + $0x10] sm:$0xff]
    %v52 = vld [vmem:[%s5 + $0x18] sm:$0xff]
    %v53 = vld [vmem:[%s6] sm:$0xff]
    %v54 = vld [vmem:[%s6 + $0x8] sm:$0xff]
    %v55 = vld [vmem:[%s6 + $0x10] sm:$0xff]
    %v56 = vld [vmem:[%s6 + $0x18] sm:$0xff]
    %v57 = vld [vmem:[%s7] sm:$0xff]
    %v58 = vld [vmem:[%s7 + $0x8] sm:$0xff]
    %v59 = vld [vmem:[%s7 + $0x10] sm:$0xff]
    %v60 = vld [vmem:[%s7 + $0x18] sm:$0xff]
    %v61 = vld [vmem:[%s8] sm:$0xff]
    %v62 = vld [vmem:[%s8 + $0x8] sm:$0xff]
    %v63 = vld [vmem:[%s8 + $0x10] sm:$0xff]
    %v64 = vld [vmem:[%s8 + $0x18] sm:$0xff]
    %v65 = vld [vmem:[%s9] sm:$0xff]
    %v66 = vld [vmem:[%s9 + $0x8] sm:$0xff]
    %v67 = vld [vmem:[%s9 + $0x10] sm:$0xff]
    %v68 = vld [vmem:[%s9 + $0x18] sm:$0xff]
    %v69 = vld [vmem:[%s10] sm:$0x1]
    %v70 = vld [vmem:[%s0] sm:$0xff]
    %v71 = vld [vmem:[%s1] sm:$0xff]
    %v72 = vld [vmem:[%s2] sm:$0xff]
    %74 = vset.pattern.permute.xlu0 0
    %75 = vperm.xlu0 %74, %v57
    %v76 = vpop.permute.xlu0 %75
    %79 = vset.pattern.permute.xlu0 0
    %80 = vperm.xlu0 %79, %v58
    %v81 = vpop.permute.xlu0 %80
    %84 = vset.pattern.permute.xlu0 0
    %85 = vperm.xlu0 %84, %v59
    %v86 = vpop.permute.xlu0 %85
    %89 = vset.pattern.permute.xlu0 0
    %90 = vperm.xlu0 %89, %v60
    %v91 = vpop.permute.xlu0 %90
    %vm93 = vcmask 261120
    %v95 = vsel %vm93, %v41, 0
    %v98 = vsel %vm93, %v42, 0
    %v101 = vsel %vm93, %v43, 0
    %v104 = vsel %vm93, %v44, 0
    %v107 = vsel %vm93, %v70, 0
    %109 = vmatpush.xpose.msra.mxu0 0.0
    %110 = vmatpush.xpose.msra.mxu0 0.0
    %111 = vmatpush.xpose.msra.mxu0 0.0
    %112 = vmatpush.xpose.msra.mxu0 0.0
    %113 = vmatpush.xpose.msra.mxu0 0.0
    %114 = vmatpush.xpose.msra.mxu0 0.0
    %115 = vmatpush.xpose.msra.mxu0 0.0
    %116 = vmatpush.xpose.msra.mxu0 0.0
    %117 = vmatpush.xpose.msra.mxu0 0.0
    %118 = vmatpush.xpose.msra.mxu0 0.0
    %119 = vmatpush.xpose.msra.mxu0 0.0
    %120 = vmatpush.xpose.msra.mxu0 0.0
    %121 = vmatpush.xpose.msra.mxu0 0.0
    %122 = vmatpush.xpose.msra.mxu0 0.0
    %123 = vmatpush.xpose.msra.mxu0 0.0
    %124 = vmatpush.xpose.msra.mxu0 %v107
    %125 = vmatmul.f32.gmra.mxu0 %v95
    %v126 = vpop.f32.mrf.mxu0
    %v127 = vadd.f32 %v76, %v126
    %128 = vmatmul.f32.gmra.mxu0 %v98
    %v129 = vpop.f32.mrf.mxu0
    %v130 = vadd.f32 %v81, %v129
    %131 = vmatmul.f32.gmra.mxu0 %v101
    %v132 = vpop.f32.mrf.mxu0
    %v133 = vadd.f32 %v86, %v132
    %134 = vmatmul.f32.gmra.mxu0 %v104
    %v135 = vpop.f32.mrf.mxu0
    %v136 = vadd.f32 %v91, %v135
    %137 = vdwg.mxu0
    %139 = vset.pattern.permute.xlu0 0
    %140 = vperm.xlu0 %139, %v61
    %v141 = vpop.permute.xlu0 %140
    %144 = vset.pattern.permute.xlu0 0
    %145 = vperm.xlu0 %144, %v62
    %v146 = vpop.permute.xlu0 %145
    %149 = vset.pattern.permute.xlu0 0
    %150 = vperm.xlu0 %149, %v63
    %v151 = vpop.permute.xlu0 %150
    %154 = vset.pattern.permute.xlu0 0
    %155 = vperm.xlu0 %154, %v64
    %v156 = vpop.permute.xlu0 %155
    %v159 = vsel %vm93, %v45, 0
    %v162 = vsel %vm93, %v46, 0
    %v165 = vsel %vm93, %v47, 0
    %v168 = vsel %vm93, %v48, 0
    %v171 = vsel %vm93, %v71, 0
    %173 = vmatpush.xpose.msra.mxu0 0.0
    %174 = vmatpush.xpose.msra.mxu0 0.0
    %175 = vmatpush.xpose.msra.mxu0 0.0
    %176 = vmatpush.xpose.msra.mxu0 0.0
    %177 = vmatpush.xpose.msra.mxu0 0.0
    %178 = vmatpush.xpose.msra.mxu0 0.0
    %179 = vmatpush.xpose.msra.mxu0 0.0
    %180 = vmatpush.xpose.msra.mxu0 0.0
    %181 = vmatpush.xpose.msra.mxu0 0.0
    %182 = vmatpush.xpose.msra.mxu0 0.0
    %183 = vmatpush.xpose.msra.mxu0 0.0
    %184 = vmatpush.xpose.msra.mxu0 0.0
    %185 = vmatpush.xpose.msra.mxu0 0.0
    %186 = vmatpush.xpose.msra.mxu0 0.0
    %187 = vmatpush.xpose.msra.mxu0 0.0
    %188 = vmatpush.xpose.msra.mxu0 %v171
    %189 = vmatmul.f32.gmra.mxu0 %v159
    %v190 = vpop.f32.mrf.mxu0
    %v191 = vadd.f32 %v141, %v190
    %192 = vmatmul.f32.gmra.mxu0 %v162
    %v193 = vpop.f32.mrf.mxu0
    %v194 = vadd.f32 %v146, %v193
    %195 = vmatmul.f32.gmra.mxu0 %v165
    %v196 = vpop.f32.mrf.mxu0
    %v197 = vadd.f32 %v151, %v196
    %198 = vmatmul.f32.gmra.mxu0 %v168
    %v199 = vpop.f32.mrf.mxu0
    %v200 = vadd.f32 %v156, %v199
    %201 = vdwg.mxu0
    %203 = vset.pattern.permute.xlu0 0
    %204 = vperm.xlu0 %203, %v65
    %v205 = vpop.permute.xlu0 %204
    %208 = vset.pattern.permute.xlu0 0
    %209 = vperm.xlu0 %208, %v66
    %v210 = vpop.permute.xlu0 %209
    %213 = vset.pattern.permute.xlu0 0
    %214 = vperm.xlu0 %213, %v67
    %v215 = vpop.permute.xlu0 %214
    %218 = vset.pattern.permute.xlu0 0
    %219 = vperm.xlu0 %218, %v68
    %v220 = vpop.permute.xlu0 %219
    %v223 = vsel %vm93, %v49, 0
    %v226 = vsel %vm93, %v50, 0
    %v229 = vsel %vm93, %v51, 0
    %v232 = vsel %vm93, %v52, 0
    %v235 = vsel %vm93, %v72, 0
    %237 = vmatpush.xpose.msra.mxu0 0.0
    %238 = vmatpush.xpose.msra.mxu0 0.0
    %239 = vmatpush.xpose.msra.mxu0 0.0
    %240 = vmatpush.xpose.msra.mxu0 0.0
    %241 = vmatpush.xpose.msra.mxu0 0.0
    %242 = vmatpush.xpose.msra.mxu0 0.0
    %243 = vmatpush.xpose.msra.mxu0 0.0
    %244 = vmatpush.xpose.msra.mxu0 0.0
    %245 = vmatpush.xpose.msra.mxu0 0.0
    %246 = vmatpush.xpose.msra.mxu0 0.0
    %247 = vmatpush.xpose.msra.mxu0 0.0
    %248 = vmatpush.xpose.msra.mxu0 0.0
    %249 = vmatpush.xpose.msra.mxu0 0.0
    %250 = vmatpush.xpose.msra.mxu0 0.0
    %251 = vmatpush.xpose.msra.mxu0 0.0
    %252 = vmatpush.xpose.msra.mxu0 %v235
    %253 = vmatmul.f32.gmra.mxu0 %v223
    %v254 = vpop.f32.mrf.mxu0
    %v255 = vadd.f32 %v205, %v254
    %256 = vmatmul.f32.gmra.mxu0 %v226
    %v257 = vpop.f32.mrf.mxu0
    %v258 = vadd.f32 %v210, %v257
    %259 = vmatmul.f32.gmra.mxu0 %v229
    %v260 = vpop.f32.mrf.mxu0
    %v261 = vadd.f32 %v215, %v260
    %262 = vmatmul.f32.gmra.mxu0 %v232
    %v263 = vpop.f32.mrf.mxu0
    %v264 = vadd.f32 %v220, %v263
    %265 = vdwg.mxu0
    %266 = vxpose.xlu0.b32.start [1/16] %v127, 128
    %267 = vxpose.xlu0.b32.cont [2/16] 0.0, 128
    %268 = vxpose.xlu0.b32.cont [3/16] 0.0, 128
    %269 = vxpose.xlu0.b32.cont [4/16] 0.0, 128
    %270 = vxpose.xlu0.b32.cont [5/16] 0.0, 128
    %271 = vxpose.xlu0.b32.cont [6/16] 0.0, 128
    %272 = vxpose.xlu0.b32.cont [7/16] 0.0, 128
    %273 = vxpose.xlu0.b32.cont [8/16] 0.0, 128
    %274 = vxpose.xlu0.b32.cont [9/16] 0.0, 128
    %275 = vxpose.xlu0.b32.cont [10/16] 0.0, 128
    %276 = vxpose.xlu0.b32.cont [11/16] 0.0, 128
    %277 = vxpose.xlu0.b32.cont [12/16] 0.0, 128
    %278 = vxpose.xlu0.b32.cont [13/16] 0.0, 128
    %279 = vxpose.xlu0.b32.cont [14/16] 0.0, 128
    %280 = vxpose.xlu0.b32.cont [15/16] 0.0, 128
    %281 = vxpose.xlu0.b32.end [16/16] 0.0, 128
    %v282 = vpop.trf.xlu0
    %v283 = vpop.trf.xlu0
    %v284 = vpop.trf.xlu0
    %v285 = vpop.trf.xlu0
    %v286 = vpop.trf.xlu0
    %v287 = vpop.trf.xlu0
    %v288 = vpop.trf.xlu0
    %v289 = vpop.trf.xlu0
    %v290 = vpop.trf.xlu0
    %v291 = vpop.trf.xlu0
    %v292 = vpop.trf.xlu0
    %v293 = vpop.trf.xlu0
    %v294 = vpop.trf.xlu0
    %v295 = vpop.trf.xlu0
    %v296 = vpop.trf.xlu0
    %v297 = vpop.trf.xlu0
    %298 = vxpose.xlu0.b32.start [1/16] %v130, 128
    %299 = vxpose.xlu0.b32.cont [2/16] 0.0, 128
    %300 = vxpose.xlu0.b32.cont [3/16] 0.0, 128
    %301 = vxpose.xlu0.b32.cont [4/16] 0.0, 128
    %302 = vxpose.xlu0.b32.cont [5/16] 0.0, 128
    %303 = vxpose.xlu0.b32.cont [6/16] 0.0, 128
    %304 = vxpose.xlu0.b32.cont [7/16] 0.0, 128
    %305 = vxpose.xlu0.b32.cont [8/16] 0.0, 128
    %306 = vxpose.xlu0.b32.cont [9/16] 0.0, 128
    %307 = vxpose.xlu0.b32.cont [10/16] 0.0, 128
    %308 = vxpose.xlu0.b32.cont [11/16] 0.0, 128
    %309 = vxpose.xlu0.b32.cont [12/16] 0.0, 128
    %310 = vxpose.xlu0.b32.cont [13/16] 0.0, 128
    %311 = vxpose.xlu0.b32.cont [14/16] 0.0, 128
    %312 = vxpose.xlu0.b32.cont [15/16] 0.0, 128
    %313 = vxpose.xlu0.b32.end [16/16] 0.0, 128
    %v314 = vpop.trf.xlu0
    %v315 = vpop.trf.xlu0
    %v316 = vpop.trf.xlu0
    %v317 = vpop.trf.xlu0
    %v318 = vpop.trf.xlu0
    %v319 = vpop.trf.xlu0
    %v320 = vpop.trf.xlu0
    %v321 = vpop.trf.xlu0
    %v322 = vpop.trf.xlu0
    %v323 = vpop.trf.xlu0
    %v324 = vpop.trf.xlu0
    %v325 = vpop.trf.xlu0
    %v326 = vpop.trf.xlu0
    %v327 = vpop.trf.xlu0
    %v328 = vpop.trf.xlu0
    %v329 = vpop.trf.xlu0
    %330 = vxpose.xlu0.b32.start [1/16] %v133, 128
    %331 = vxpose.xlu0.b32.cont [2/16] 0.0, 128
    %332 = vxpose.xlu0.b32.cont [3/16] 0.0, 128
    %333 = vxpose.xlu0.b32.cont [4/16] 0.0, 128
    %334 = vxpose.xlu0.b32.cont [5/16] 0.0, 128
    %335 = vxpose.xlu0.b32.cont [6/16] 0.0, 128
    %336 = vxpose.xlu0.b32.cont [7/16] 0.0, 128
    %337 = vxpose.xlu0.b32.cont [8/16] 0.0, 128
    %338 = vxpose.xlu0.b32.cont [9/16] 0.0, 128
    %339 = vxpose.xlu0.b32.cont [10/16] 0.0, 128
    %340 = vxpose.xlu0.b32.cont [11/16] 0.0, 128
    %341 = vxpose.xlu0.b32.cont [12/16] 0.0, 128
    %342 = vxpose.xlu0.b32.cont [13/16] 0.0, 128
    %343 = vxpose.xlu0.b32.cont [14/16] 0.0, 128
    %344 = vxpose.xlu0.b32.cont [15/16] 0.0, 128
    %345 = vxpose.xlu0.b32.end [16/16] 0.0, 128
    %v346 = vpop.trf.xlu0
    %v347 = vpop.trf.xlu0
    %v348 = vpop.trf.xlu0
    %v349 = vpop.trf.xlu0
    %v350 = vpop.trf.xlu0
    %v351 = vpop.trf.xlu0
    %v352 = vpop.trf.xlu0
    %v353 = vpop.trf.xlu0
    %v354 = vpop.trf.xlu0
    %v355 = vpop.trf.xlu0
    %v356 = vpop.trf.xlu0
    %v357 = vpop.trf.xlu0
    %v358 = vpop.trf.xlu0
    %v359 = vpop.trf.xlu0
    %v360 = vpop.trf.xlu0
    %v361 = vpop.trf.xlu0
    %362 = vxpose.xlu0.b32.start [1/16] %v136, 128
    %363 = vxpose.xlu0.b32.cont [2/16] 0.0, 128
    %364 = vxpose.xlu0.b32.cont [3/16] 0.0, 128
    %365 = vxpose.xlu0.b32.cont [4/16] 0.0, 128
    %366 = vxpose.xlu0.b32.cont [5/16] 0.0, 128
    %367 = vxpose.xlu0.b32.cont [6/16] 0.0, 128
    %368 = vxpose.xlu0.b32.cont [7/16] 0.0, 128
    %369 = vxpose.xlu0.b32.cont [8/16] 0.0, 128
    %370 = vxpose.xlu0.b32.cont [9/16] 0.0, 128
    %371 = vxpose.xlu0.b32.cont [10/16] 0.0, 128
    %372 = vxpose.xlu0.b32.cont [11/16] 0.0, 128
    %373 = vxpose.xlu0.b32.cont [12/16] 0.0, 128
    %374 = vxpose.xlu0.b32.cont [13/16] 0.0, 128
    %375 = vxpose.xlu0.b32.cont [14/16] 0.0, 128
    %376 = vxpose.xlu0.b32.cont [15/16] 0.0, 128
    %377 = vxpose.xlu0.b32.end [16/16] 0.0, 128
    %v378 = vpop.trf.xlu0
    %v379 = vpop.trf.xlu0
    %v380 = vpop.trf.xlu0
    %v381 = vpop.trf.xlu0
    %v382 = vpop.trf.xlu0
    %v383 = vpop.trf.xlu0
    %v384 = vpop.trf.xlu0
    %v385 = vpop.trf.xlu0
    %v386 = vpop.trf.xlu0
    %v387 = vpop.trf.xlu0
    %v388 = vpop.trf.xlu0
    %v389 = vpop.trf.xlu0
    %v390 = vpop.trf.xlu0
    %v391 = vpop.trf.xlu0
    %v392 = vpop.trf.xlu0
    %v393 = vpop.trf.xlu0
    %vm394 = vcmask 64512
    %v396 = vsel %vm394, %v282, 0
    %398 = vmatpush.msra.mxu0 0.0
    %399 = vmatpush.msra.mxu0 0.0
    %400 = vmatpush.msra.mxu0 0.0
    %401 = vmatpush.msra.mxu0 0.0
    %402 = vmatpush.msra.mxu0 0.0
    %403 = vmatpush.msra.mxu0 0.0
    %404 = vmatpush.msra.mxu0 0.0
    %405 = vmatpush.msra.mxu0 0.0
    %406 = vmatpush.msra.mxu0 0.0
    %407 = vmatpush.msra.mxu0 0.0
    %408 = vmatpush.msra.mxu0 0.0
    %409 = vmatpush.msra.mxu0 0.0
    %410 = vmatpush.msra.mxu0 0.0
    %411 = vmatpush.msra.mxu0 0.0
    %412 = vmatpush.msra.mxu0 0.0
    %413 = vmatpush.msra.mxu0 %v191
    %414 = vmatmul.f32.gmra.mxu0 %v396
    %v415 = vpop.f32.mrf.mxu0
    %v416 = vadd.f32 0.0, %v415
    %417 = vdwg.mxu0
    %v419 = vsel %vm394, %v314, 0
    %421 = vmatpush.msra.mxu0 0.0
    %422 = vmatpush.msra.mxu0 0.0
    %423 = vmatpush.msra.mxu0 0.0
    %424 = vmatpush.msra.mxu0 0.0
    %425 = vmatpush.msra.mxu0 0.0
    %426 = vmatpush.msra.mxu0 0.0
    %427 = vmatpush.msra.mxu0 0.0
    %428 = vmatpush.msra.mxu0 0.0
    %429 = vmatpush.msra.mxu0 0.0
    %430 = vmatpush.msra.mxu0 0.0
    %431 = vmatpush.msra.mxu0 0.0
    %432 = vmatpush.msra.mxu0 0.0
    %433 = vmatpush.msra.mxu0 0.0
    %434 = vmatpush.msra.mxu0 0.0
    %435 = vmatpush.msra.mxu0 0.0
    %436 = vmatpush.msra.mxu0 %v194
    %437 = vmatmul.f32.gmra.mxu0 %v419
    %v438 = vpop.f32.mrf.mxu0
    %v439 = vadd.f32 0.0, %v438
    %440 = vdwg.mxu0
    %v442 = vsel %vm394, %v346, 0
    %444 = vmatpush.msra.mxu0 0.0
    %445 = vmatpush.msra.mxu0 0.0
    %446 = vmatpush.msra.mxu0 0.0
    %447 = vmatpush.msra.mxu0 0.0
    %448 = vmatpush.msra.mxu0 0.0
    %449 = vmatpush.msra.mxu0 0.0
    %450 = vmatpush.msra.mxu0 0.0
    %451 = vmatpush.msra.mxu0 0.0
    %452 = vmatpush.msra.mxu0 0.0
    %453 = vmatpush.msra.mxu0 0.0
    %454 = vmatpush.msra.mxu0 0.0
    %455 = vmatpush.msra.mxu0 0.0
    %456 = vmatpush.msra.mxu0 0.0
    %457 = vmatpush.msra.mxu0 0.0
    %458 = vmatpush.msra.mxu0 0.0
    %459 = vmatpush.msra.mxu0 %v197
    %460 = vmatmul.f32.gmra.mxu0 %v442
    %v461 = vpop.f32.mrf.mxu0
    %v462 = vadd.f32 0.0, %v461
    %463 = vdwg.mxu0
    %v465 = vsel %vm394, %v378, 0
    %467 = vmatpush.msra.mxu0 0.0
    %468 = vmatpush.msra.mxu0 0.0
    %469 = vmatpush.msra.mxu0 0.0
    %470 = vmatpush.msra.mxu0 0.0
    %471 = vmatpush.msra.mxu0 0.0
    %472 = vmatpush.msra.mxu0 0.0
    %473 = vmatpush.msra.mxu0 0.0
    %474 = vmatpush.msra.mxu0 0.0
    %475 = vmatpush.msra.mxu0 0.0
    %476 = vmatpush.msra.mxu0 0.0
    %477 = vmatpush.msra.mxu0 0.0
    %478 = vmatpush.msra.mxu0 0.0
    %479 = vmatpush.msra.mxu0 0.0
    %480 = vmatpush.msra.mxu0 0.0
    %481 = vmatpush.msra.mxu0 0.0
    %482 = vmatpush.msra.mxu0 %v200
    %483 = vmatmul.f32.gmra.mxu0 %v465
    %v484 = vpop.f32.mrf.mxu0
    %v485 = vadd.f32 0.0, %v484
    %486 = vdwg.mxu0
    %v487 = vsel %vm394, %v416, -inf
    %488 = vmax.xlane.f32.xlu0 %v487
    %v489 = vpop.xlane.xlu0 %488
    %v490 = vsel %vm394, %v439, -inf
    %491 = vmax.xlane.f32.xlu0 %v490
    %v492 = vpop.xlane.xlu0 %491
    %v493 = vsel %vm394, %v462, -inf
    %494 = vmax.xlane.f32.xlu0 %v493
    %v495 = vpop.xlane.xlu0 %494
    %v496 = vsel %vm394, %v485, -inf
    %497 = vmax.xlane.f32.xlu0 %v496
    %v498 = vpop.xlane.xlu0 %497
    %v499 = vsub.f32 %v416, %v489
    %v500 = vsub.f32 %v439, %v492
    %v501 = vsub.f32 %v462, %v495
    %v502 = vsub.f32 %v485, %v498
    %v503 = vmul.f32 %v499, 1.442695
    %v504 = vpow.pop %v503
    %v505 = vmul.f32 %v500, 1.442695
    %v506 = vpow.pop %v505
    %v507 = vmul.f32 %v501, 1.442695
    %v508 = vpow.pop %v507
    %v509 = vmul.f32 %v502, 1.442695
    %v510 = vpow.pop %v509
    %v511 = vsel %vm394, %v504, 0.0
    %512 = vadd.xlane.f32.xlu0 %v511
    %v513 = vpop.xlane.xlu0 %512
    %v514 = vsel %vm394, %v506, 0.0
    %515 = vadd.xlane.f32.xlu0 %v514
    %v516 = vpop.xlane.xlu0 %515
    %v517 = vsel %vm394, %v508, 0.0
    %518 = vadd.xlane.f32.xlu0 %v517
    %v519 = vpop.xlane.xlu0 %518
    %v520 = vsel %vm394, %v510, 0.0
    %521 = vadd.xlane.f32.xlu0 %v520
    %v522 = vpop.xlane.xlu0 %521
    %v523 = vrcp.pop %v513
    %v524 = vmul.f32 %v513, %v523
    %v525 = vsub.f32 1.0, %v524
    %v526 = vmul.f32 %v523, %v525
    %v527 = vadd.f32 %v523, %v526
    %vm528 = vweird.f32 %v513
    %vm529 = vweird.f32 %v523
    %vm530 = vmor %vm528, %vm529
    %v531 = vsel %vm530, %v523, %v527
    %v532 = vand.u32 2147483647, %v513
    %vm533 = vcmp.eq.f32.partialorder %v532, 8.507059e+37
    %v534 = vand.u32 %v513, 2147483648
    %v535 = vor.u32 1.1754944e-38, %v534
    %v536 = vsel %vm533, %v535, %v531
    %v537 = vmul.f32 %v504, %v536
    %v538 = vrcp.pop %v516
    %v539 = vmul.f32 %v516, %v538
    %v540 = vsub.f32 1.0, %v539
    %v541 = vmul.f32 %v538, %v540
    %v542 = vadd.f32 %v538, %v541
    %vm543 = vweird.f32 %v516
    %vm544 = vweird.f32 %v538
    %vm545 = vmor %vm543, %vm544
    %v546 = vsel %vm545, %v538, %v542
    %v547 = vand.u32 2147483647, %v516
    %vm548 = vcmp.eq.f32.partialorder %v547, 8.507059e+37
    %v549 = vand.u32 %v516, 2147483648
    %v550 = vor.u32 1.1754944e-38, %v549
    %v551 = vsel %vm548, %v550, %v546
    %v552 = vmul.f32 %v506, %v551
    %v553 = vrcp.pop %v519
    %v554 = vmul.f32 %v519, %v553
    %v555 = vsub.f32 1.0, %v554
    %v556 = vmul.f32 %v553, %v555
    %v557 = vadd.f32 %v553, %v556
    %vm558 = vweird.f32 %v519
    %vm559 = vweird.f32 %v553
    %vm560 = vmor %vm558, %vm559
    %v561 = vsel %vm560, %v553, %v557
    %v562 = vand.u32 2147483647, %v519
    %vm563 = vcmp.eq.f32.partialorder %v562, 8.507059e+37
    %v564 = vand.u32 %v519, 2147483648
    %v565 = vor.u32 1.1754944e-38, %v564
    %v566 = vsel %vm563, %v565, %v561
    %v567 = vmul.f32 %v508, %v566
    %v568 = vrcp.pop %v522
    %v569 = vmul.f32 %v522, %v568
    %v570 = vsub.f32 1.0, %v569
    %v571 = vmul.f32 %v568, %v570
    %v572 = vadd.f32 %v568, %v571
    %vm573 = vweird.f32 %v522
    %vm574 = vweird.f32 %v568
    %vm575 = vmor %vm573, %vm574
    %v576 = vsel %vm575, %v568, %v572
    %v577 = vand.u32 2147483647, %v522
    %vm578 = vcmp.eq.f32.partialorder %v577, 8.507059e+37
    %v579 = vand.u32 %v522, 2147483648
    %v580 = vor.u32 1.1754944e-38, %v579
    %v581 = vsel %vm578, %v580, %v576
    %v582 = vmul.f32 %v510, %v581
    %583 = vst.msk [vmem:[#allocation2] sm:$0xff] %vm394, %v537
    %584 = vst.msk [vmem:[#allocation2 + $0x8] sm:$0xff] %vm394, %v552
    %585 = vst.msk [vmem:[#allocation2 + $0x10] sm:$0xff] %vm394, %v567
    %586 = vst.msk [vmem:[#allocation2 + $0x18] sm:$0xff] %vm394, %v582
    %v588 = vsel %vm394, %v537, 0
    %v591 = vsel %vm394, %v255, 0
    %593 = vmatpush.xpose.msra.mxu0 0.0
    %594 = vmatpush.xpose.msra.mxu0 0.0
    %595 = vmatpush.xpose.msra.mxu0 0.0
    %596 = vmatpush.xpose.msra.mxu0 0.0
    %597 = vmatpush.xpose.msra.mxu0 0.0
    %598 = vmatpush.xpose.msra.mxu0 0.0
    %599 = vmatpush.xpose.msra.mxu0 0.0
    %600 = vmatpush.xpose.msra.mxu0 0.0
    %601 = vmatpush.xpose.msra.mxu0 0.0
    %602 = vmatpush.xpose.msra.mxu0 0.0
    %603 = vmatpush.xpose.msra.mxu0 0.0
    %604 = vmatpush.xpose.msra.mxu0 0.0
    %605 = vmatpush.xpose.msra.mxu0 0.0
    %606 = vmatpush.xpose.msra.mxu0 0.0
    %607 = vmatpush.xpose.msra.mxu0 0.0
    %608 = vmatpush.xpose.msra.mxu0 %v591
    %609 = vmatmul.f32.gmra.mxu0 %v588
    %v610 = vpop.f32.mrf.mxu0
    %v611 = vadd.f32 0.0, %v610
    %612 = vdwg.mxu0
    %v614 = vsel %vm394, %v552, 0
    %v617 = vsel %vm394, %v258, 0
    %619 = vmatpush.xpose.msra.mxu0 0.0
    %620 = vmatpush.xpose.msra.mxu0 0.0
    %621 = vmatpush.xpose.msra.mxu0 0.0
    %622 = vmatpush.xpose.msra.mxu0 0.0
    %623 = vmatpush.xpose.msra.mxu0 0.0
    %624 = vmatpush.xpose.msra.mxu0 0.0
    %625 = vmatpush.xpose.msra.mxu0 0.0
    %626 = vmatpush.xpose.msra.mxu0 0.0
    %627 = vmatpush.xpose.msra.mxu0 0.0
    %628 = vmatpush.xpose.msra.mxu0 0.0
    %629 = vmatpush.xpose.msra.mxu0 0.0
    %630 = vmatpush.xpose.msra.mxu0 0.0
    %631 = vmatpush.xpose.msra.mxu0 0.0
    %632 = vmatpush.xpose.msra.mxu0 0.0
    %633 = vmatpush.xpose.msra.mxu0 0.0
    %634 = vmatpush.xpose.msra.mxu0 %v617
    %635 = vmatmul.f32.gmra.mxu0 %v614
    %v636 = vpop.f32.mrf.mxu0
    %v637 = vadd.f32 0.0, %v636
    %638 = vdwg.mxu0
    %v640 = vsel %vm394, %v567, 0
    %v643 = vsel %vm394, %v261, 0
    %645 = vmatpush.xpose.msra.mxu0 0.0
    %646 = vmatpush.xpose.msra.mxu0 0.0
    %647 = vmatpush.xpose.msra.mxu0 0.0
    %648 = vmatpush.xpose.msra.mxu0 0.0
    %649 = vmatpush.xpose.msra.mxu0 0.0
    %650 = vmatpush.xpose.msra.mxu0 0.0
    %651 = vmatpush.xpose.msra.mxu0 0.0
    %652 = vmatpush.xpose.msra.mxu0 0.0
    %653 = vmatpush.xpose.msra.mxu0 0.0
    %654 = vmatpush.xpose.msra.mxu0 0.0
    %655 = vmatpush.xpose.msra.mxu0 0.0
    %656 = vmatpush.xpose.msra.mxu0 0.0
    %657 = vmatpush.xpose.msra.mxu0 0.0
    %658 = vmatpush.xpose.msra.mxu0 0.0
    %659 = vmatpush.xpose.msra.mxu0 0.0
    %660 = vmatpush.xpose.msra.mxu0 %v643
    %661 = vmatmul.f32.gmra.mxu0 %v640
    %v662 = vpop.f32.mrf.mxu0
    %v663 = vadd.f32 0.0, %v662
    %664 = vdwg.mxu0
    %v666 = vsel %vm394, %v582, 0
    %v669 = vsel %vm394, %v264, 0
    %671 = vmatpush.xpose.msra.mxu0 0.0
    %672 = vmatpush.xpose.msra.mxu0 0.0
    %673 = vmatpush.xpose.msra.mxu0 0.0
    %674 = vmatpush.xpose.msra.mxu0 0.0
    %675 = vmatpush.xpose.msra.mxu0 0.0
    %676 = vmatpush.xpose.msra.mxu0 0.0
    %677 = vmatpush.xpose.msra.mxu0 0.0
    %678 = vmatpush.xpose.msra.mxu0 0.0
    %679 = vmatpush.xpose.msra.mxu0 0.0
    %680 = vmatpush.xpose.msra.mxu0 0.0
    %681 = vmatpush.xpose.msra.mxu0 0.0
    %682 = vmatpush.xpose.msra.mxu0 0.0
    %683 = vmatpush.xpose.msra.mxu0 0.0
    %684 = vmatpush.xpose.msra.mxu0 0.0
    %685 = vmatpush.xpose.msra.mxu0 0.0
    %686 = vmatpush.xpose.msra.mxu0 %v669
    %687 = vmatmul.f32.gmra.mxu0 %v666
    %v688 = vpop.f32.mrf.mxu0
    %v689 = vadd.f32 0.0, %v688
    %690 = vdwg.mxu0
    %v692 = vsel %vm394, %v611, 0
    %694 = vmatpush.msra.mxu0 0.0
    %695 = vmatpush.msra.mxu0 0.0
    %696 = vmatpush.msra.mxu0 0.0
    %697 = vmatpush.msra.mxu0 0.0
    %698 = vmatpush.msra.mxu0 0.0
    %699 = vmatpush.msra.mxu0 0.0
    %700 = vmatpush.msra.mxu0 0.0
    %701 = vmatpush.msra.mxu0 0.0
    %702 = vmatpush.msra.mxu0 0.0
    %703 = vmatpush.msra.mxu0 0.0
    %704 = vmatpush.msra.mxu0 0.0
    %705 = vmatpush.msra.mxu0 0.0
    %706 = vmatpush.msra.mxu0 0.0
    %707 = vmatpush.msra.mxu0 0.0
    %708 = vmatpush.msra.mxu0 0.0
    %709 = vmatpush.msra.mxu0 %v53
    %710 = vmatmul.f32.gmra.mxu0 %v692
    %v711 = vpop.f32.mrf.mxu0
    %v712 = vadd.f32 0.0, %v711
    %713 = vdwg.mxu0
    %v715 = vsel %vm394, %v637, 0
    %717 = vmatpush.msra.mxu0 0.0
    %718 = vmatpush.msra.mxu0 0.0
    %719 = vmatpush.msra.mxu0 0.0
    %720 = vmatpush.msra.mxu0 0.0
    %721 = vmatpush.msra.mxu0 0.0
    %722 = vmatpush.msra.mxu0 0.0
    %723 = vmatpush.msra.mxu0 0.0
    %724 = vmatpush.msra.mxu0 0.0
    %725 = vmatpush.msra.mxu0 0.0
    %726 = vmatpush.msra.mxu0 0.0
    %727 = vmatpush.msra.mxu0 0.0
    %728 = vmatpush.msra.mxu0 0.0
    %729 = vmatpush.msra.mxu0 0.0
    %730 = vmatpush.msra.mxu0 0.0
    %731 = vmatpush.msra.mxu0 0.0
    %732 = vmatpush.msra.mxu0 %v54
    %733 = vmatmul.f32.gmra.mxu0 %v715
    %v734 = vpop.f32.mrf.mxu0
    %v735 = vadd.f32 0.0, %v734
    %736 = vdwg.mxu0
    %v738 = vsel %vm394, %v663, 0
    %740 = vmatpush.msra.mxu0 0.0
    %741 = vmatpush.msra.mxu0 0.0
    %742 = vmatpush.msra.mxu0 0.0
    %743 = vmatpush.msra.mxu0 0.0
    %744 = vmatpush.msra.mxu0 0.0
    %745 = vmatpush.msra.mxu0 0.0
    %746 = vmatpush.msra.mxu0 0.0
    %747 = vmatpush.msra.mxu0 0.0
    %748 = vmatpush.msra.mxu0 0.0
    %749 = vmatpush.msra.mxu0 0.0
    %750 = vmatpush.msra.mxu0 0.0
    %751 = vmatpush.msra.mxu0 0.0
    %752 = vmatpush.msra.mxu0 0.0
    %753 = vmatpush.msra.mxu0 0.0
    %754 = vmatpush.msra.mxu0 0.0
    %755 = vmatpush.msra.mxu0 %v55
    %756 = vmatmul.f32.gmra.mxu0 %v738
    %v757 = vpop.f32.mrf.mxu0
    %v758 = vadd.f32 0.0, %v757
    %759 = vdwg.mxu0
    %v761 = vsel %vm394, %v689, 0
    %763 = vmatpush.msra.mxu0 0.0
    %764 = vmatpush.msra.mxu0 0.0
    %765 = vmatpush.msra.mxu0 0.0
    %766 = vmatpush.msra.mxu0 0.0
    %767 = vmatpush.msra.mxu0 0.0
    %768 = vmatpush.msra.mxu0 0.0
    %769 = vmatpush.msra.mxu0 0.0
    %770 = vmatpush.msra.mxu0 0.0
    %771 = vmatpush.msra.mxu0 0.0
    %772 = vmatpush.msra.mxu0 0.0
    %773 = vmatpush.msra.mxu0 0.0
    %774 = vmatpush.msra.mxu0 0.0
    %775 = vmatpush.msra.mxu0 0.0
    %776 = vmatpush.msra.mxu0 0.0
    %777 = vmatpush.msra.mxu0 0.0
    %778 = vmatpush.msra.mxu0 %v56
    %779 = vmatmul.f32.gmra.mxu0 %v761
    %v780 = vpop.f32.mrf.mxu0
    %v781 = vadd.f32 0.0, %v780
    %782 = vdwg.mxu0
    %v783 = vsel %vm93, %v712, 0.0
    %v784 = vsel %vm93, %v735, 0.0
    %v785 = vadd.f32 %v783, %v784
    %v786 = vsel %vm93, %v758, 0.0
    %v787 = vadd.f32 %v785, %v786
    %v788 = vsel %vm93, %v781, 0.0
    %v789 = vadd.f32 %v787, %v788
    %v791 = vperm.slane %v69, 0
    %v793 = vadd.f32 %v789, %v791
    %794 = vst.msk [vmem:[%s11] sm:$0xff] %vm93, %v793
    %s795 = scalar_lea.vmem %s0, 8
    %v796 = vld [vmem:[%s795] sm:$0xff]
    %s797 = scalar_lea.vmem %s1, 8
    %v798 = vld [vmem:[%s797] sm:$0xff]
    %s799 = scalar_lea.vmem %s2, 8
    %v800 = vld [vmem:[%s799] sm:$0xff]
    %v802 = vsel %vm93, %v796, 0
    %804 = vmatpush.xpose.msra.mxu0 0.0
    %805 = vmatpush.xpose.msra.mxu0 0.0
    %806 = vmatpush.xpose.msra.mxu0 0.0
    %807 = vmatpush.xpose.msra.mxu0 0.0
    %808 = vmatpush.xpose.msra.mxu0 0.0
    %809 = vmatpush.xpose.msra.mxu0 0.0
    %810 = vmatpush.xpose.msra.mxu0 0.0
    %811 = vmatpush.xpose.msra.mxu0 0.0
    %812 = vmatpush.xpose.msra.mxu0 0.0
    %813 = vmatpush.xpose.msra.mxu0 0.0
    %814 = vmatpush.xpose.msra.mxu0 0.0
    %815 = vmatpush.xpose.msra.mxu0 0.0
    %816 = vmatpush.xpose.msra.mxu0 0.0
    %817 = vmatpush.xpose.msra.mxu0 0.0
    %818 = vmatpush.xpose.msra.mxu0 0.0
    %819 = vmatpush.xpose.msra.mxu0 %v802
    %820 = vmatmul.f32.gmra.mxu0 %v95
    %v821 = vpop.f32.mrf.mxu0
    %v822 = vadd.f32 %v76, %v821
    %823 = vmatmul.f32.gmra.mxu0 %v98
    %v824 = vpop.f32.mrf.mxu0
    %v825 = vadd.f32 %v81, %v824
    %826 = vmatmul.f32.gmra.mxu0 %v101
    %v827 = vpop.f32.mrf.mxu0
    %v828 = vadd.f32 %v86, %v827
    %829 = vmatmul.f32.gmra.mxu0 %v104
    %v830 = vpop.f32.mrf.mxu0
    %v831 = vadd.f32 %v91, %v830
    %832 = vdwg.mxu0
    %v834 = vsel %vm93, %v798, 0
    %836 = vmatpush.xpose.msra.mxu0 0.0
    %837 = vmatpush.xpose.msra.mxu0 0.0
    %838 = vmatpush.xpose.msra.mxu0 0.0
    %839 = vmatpush.xpose.msra.mxu0 0.0
    %840 = vmatpush.xpose.msra.mxu0 0.0
    %841 = vmatpush.xpose.msra.mxu0 0.0
    %842 = vmatpush.xpose.msra.mxu0 0.0
    %843 = vmatpush.xpose.msra.mxu0 0.0
    %844 = vmatpush.xpose.msra.mxu0 0.0
    %845 = vmatpush.xpose.msra.mxu0 0.0
    %846 = vmatpush.xpose.msra.mxu0 0.0
    %847 = vmatpush.xpose.msra.mxu0 0.0
    %848 = vmatpush.xpose.msra.mxu0 0.0
    %849 = vmatpush.xpose.msra.mxu0 0.0
    %850 = vmatpush.xpose.msra.mxu0 0.0
    %851 = vmatpush.xpose.msra.mxu0 %v834
    %852 = vmatmul.f32.gmra.mxu0 %v159
    %v853 = vpop.f32.mrf.mxu0
    %v854 = vadd.f32 %v141, %v853
    %855 = vmatmul.f32.gmra.mxu0 %v162
    %v856 = vpop.f32.mrf.mxu0
    %v857 = vadd.f32 %v146, %v856
    %858 = vmatmul.f32.gmra.mxu0 %v165
    %v859 = vpop.f32.mrf.mxu0
    %v860 = vadd.f32 %v151, %v859
    %861 = vmatmul.f32.gmra.mxu0 %v168
    %v862 = vpop.f32.mrf.mxu0
    %v863 = vadd.f32 %v156, %v862
    %864 = vdwg.mxu0
    %v866 = vsel %vm93, %v800, 0
    %868 = vmatpush.xpose.msra.mxu0 0.0
    %869 = vmatpush.xpose.msra.mxu0 0.0
    %870 = vmatpush.xpose.msra.mxu0 0.0
    %871 = vmatpush.xpose.msra.mxu0 0.0
    %872 = vmatpush.xpose.msra.mxu0 0.0
    %873 = vmatpush.xpose.msra.mxu0 0.0
    %874 = vmatpush.xpose.msra.mxu0 0.0
    %875 = vmatpush.xpose.msra.mxu0 0.0
    %876 = vmatpush.xpose.msra.mxu0 0.0
    %877 = vmatpush.xpose.msra.mxu0 0.0
    %878 = vmatpush.xpose.msra.mxu0 0.0
    %879 = vmatpush.xpose.msra.mxu0 0.0
    %880 = vmatpush.xpose.msra.mxu0 0.0
    %881 = vmatpush.xpose.msra.mxu0 0.0
    %882 = vmatpush.xpose.msra.mxu0 0.0
    %883 = vmatpush.xpose.msra.mxu0 %v866
    %884 = vmatmul.f32.gmra.mxu0 %v223
    %v885 = vpop.f32.mrf.mxu0
    %v886 = vadd.f32 %v205, %v885
    %887 = vmatmul.f32.gmra.mxu0 %v226
    %v888 = vpop.f32.mrf.mxu0
    %v889 = vadd.f32 %v210, %v888
    %890 = vmatmul.f32.gmra.mxu0 %v229
    %v891 = vpop.f32.mrf.mxu0
    %v892 = vadd.f32 %v215, %v891
    %893 = vmatmul.f32.gmra.mxu0 %v232
    %v894 = vpop.f32.mrf.mxu0
    %v895 = vadd.f32 %v220, %v894
    %896 = vdwg.mxu0
    %897 = vxpose.xlu0.b32.start [1/16] %v822, 128
    %898 = vxpose.xlu0.b32.cont [2/16] 0.0, 128
    %899 = vxpose.xlu0.b32.cont [3/16] 0.0, 128
    %900 = vxpose.xlu0.b32.cont [4/16] 0.0, 128
    %901 = vxpose.xlu0.b32.cont [5/16] 0.0, 128
    %902 = vxpose.xlu0.b32.cont [6/16] 0.0, 128
    %903 = vxpose.xlu0.b32.cont [7/16] 0.0, 128
    %904 = vxpose.xlu0.b32.cont [8/16] 0.0, 128
    %905 = vxpose.xlu0.b32.cont [9/16] 0.0, 128
    %906 = vxpose.xlu0.b32.cont [10/16] 0.0, 128
    %907 = vxpose.xlu0.b32.cont [11/16] 0.0, 128
    %908 = vxpose.xlu0.b32.cont [12/16] 0.0, 128
    %909 = vxpose.xlu0.b32.cont [13/16] 0.0, 128
    %910 = vxpose.xlu0.b32.cont [14/16] 0.0, 128
    %911 = vxpose.xlu0.b32.cont [15/16] 0.0, 128
    %912 = vxpose.xlu0.b32.end [16/16] 0.0, 128
    %v913 = vpop.trf.xlu0
    %v914 = vpop.trf.xlu0
    %v915 = vpop.trf.xlu0
    %v916 = vpop.trf.xlu0
    %v917 = vpop.trf.xlu0
    %v918 = vpop.trf.xlu0
    %v919 = vpop.trf.xlu0
    %v920 = vpop.trf.xlu0
    %v921 = vpop.trf.xlu0
    %v922 = vpop.trf.xlu0
    %v923 = vpop.trf.xlu0
    %v924 = vpop.trf.xlu0
    %v925 = vpop.trf.xlu0
    %v926 = vpop.trf.xlu0
    %v927 = vpop.trf.xlu0
    %v928 = vpop.trf.xlu0
    %929 = vxpose.xlu0.b32.start [1/16] %v825, 128
    %930 = vxpose.xlu0.b32.cont [2/16] 0.0, 128
    %931 = vxpose.xlu0.b32.cont [3/16] 0.0, 128
    %932 = vxpose.xlu0.b32.cont [4/16] 0.0, 128
    %933 = vxpose.xlu0.b32.cont [5/16] 0.0, 128
    %934 = vxpose.xlu0.b32.cont [6/16] 0.0, 128
    %935 = vxpose.xlu0.b32.cont [7/16] 0.0, 128
    %936 = vxpose.xlu0.b32.cont [8/16] 0.0, 128
    %937 = vxpose.xlu0.b32.cont [9/16] 0.0, 128
    %938 = vxpose.xlu0.b32.cont [10/16] 0.0, 128
    %939 = vxpose.xlu0.b32.cont [11/16] 0.0, 128
    %940 = vxpose.xlu0.b32.cont [12/16] 0.0, 128
    %941 = vxpose.xlu0.b32.cont [13/16] 0.0, 128
    %942 = vxpose.xlu0.b32.cont [14/16] 0.0, 128
    %943 = vxpose.xlu0.b32.cont [15/16] 0.0, 128
    %944 = vxpose.xlu0.b32.end [16/16] 0.0, 128
    %v945 = vpop.trf.xlu0
    %v946 = vpop.trf.xlu0
    %v947 = vpop.trf.xlu0
    %v948 = vpop.trf.xlu0
    %v949 = vpop.trf.xlu0
    %v950 = vpop.trf.xlu0
    %v951 = vpop.trf.xlu0
    %v952 = vpop.trf.xlu0
    %v953 = vpop.trf.xlu0
    %v954 = vpop.trf.xlu0
    %v955 = vpop.trf.xlu0
    %v956 = vpop.trf.xlu0
    %v957 = vpop.trf.xlu0
    %v958 = vpop.trf.xlu0
    %v959 = vpop.trf.xlu0
    %v960 = vpop.trf.xlu0
    %961 = vxpose.xlu0.b32.start [1/16] %v828, 128
    %962 = vxpose.xlu0.b32.cont [2/16] 0.0, 128
    %963 = vxpose.xlu0.b32.cont [3/16] 0.0, 128
    %964 = vxpose.xlu0.b32.cont [4/16] 0.0, 128
    %965 = vxpose.xlu0.b32.cont [5/16] 0.0, 128
    %966 = vxpose.xlu0.b32.cont [6/16] 0.0, 128
    %967 = vxpose.xlu0.b32.cont [7/16] 0.0, 128
    %968 = vxpose.xlu0.b32.cont [8/16] 0.0, 128
    %969 = vxpose.xlu0.b32.cont [9/16] 0.0, 128
    %970 = vxpose.xlu0.b32.cont [10/16] 0.0, 128
    %971 = vxpose.xlu0.b32.cont [11/16] 0.0, 128
    %972 = vxpose.xlu0.b32.cont [12/16] 0.0, 128
    %973 = vxpose.xlu0.b32.cont [13/16] 0.0, 128
    %974 = vxpose.xlu0.b32.cont [14/16] 0.0, 128
    %975 = vxpose.xlu0.b32.cont [15/16] 0.0, 128
    %976 = vxpose.xlu0.b32.end [16/16] 0.0, 128
    %v977 = vpop.trf.xlu0
    %v978 = vpop.trf.xlu0
    %v979 = vpop.trf.xlu0
    %v980 = vpop.trf.xlu0
    %v981 = vpop.trf.xlu0
    %v982 = vpop.trf.xlu0
    %v983 = vpop.trf.xlu0
    %v984 = vpop.trf.xlu0
    %v985 = vpop.trf.xlu0
    %v986 = vpop.trf.xlu0
    %v987 = vpop.trf.xlu0
    %v988 = vpop.trf.xlu0
    %v989 = vpop.trf.xlu0
    %v990 = vpop.trf.xlu0
    %v991 = vpop.trf.xlu0
    %v992 = vpop.trf.xlu0
    %993 = vxpose.xlu0.b32.start [1/16] %v831, 128
    %994 = vxpose.xlu0.b32.cont [2/16] 0.0, 128
    %995 = vxpose.xlu0.b32.cont [3/16] 0.0, 128
    %996 = vxpose.xlu0.b32.cont [4/16] 0.0, 128
    %997 = vxpose.xlu0.b32.cont [5/16] 0.0, 128
    %998 = vxpose.xlu0.b32.cont [6/16] 0.0, 128
    %999 = vxpose.xlu0.b32.cont [7/16] 0.0, 128
    %1000 = vxpose.xlu0.b32.cont [8/16] 0.0, 128
    %1001 = vxpose.xlu0.b32.cont [9/16] 0.0, 128
    %1002 = vxpose.xlu0.b32.cont [10/16] 0.0, 128
    %1003 = vxpose.xlu0.b32.cont [11/16] 0.0, 128
    %1004 = vxpose.xlu0.b32.cont [12/16] 0.0, 128
    %1005 = vxpose.xlu0.b32.cont [13/16] 0.0, 128
    %1006 = vxpose.xlu0.b32.cont [14/16] 0.0, 128
    %1007 = vxpose.xlu0.b32.cont [15/16] 0.0, 128
    %1008 = vxpose.xlu0.b32.end [16/16] 0.0, 128
    %v1009 = vpop.trf.xlu0
    %v1010 = vpop.trf.xlu0
    %v1011 = vpop.trf.xlu0
    %v1012 = vpop.trf.xlu0
    %v1013 = vpop.trf.xlu0
    %v1014 = vpop.trf.xlu0
    %v1015 = vpop.trf.xlu0
    %v1016 = vpop.trf.xlu0
    %v1017 = vpop.trf.xlu0
    %v1018 = vpop.trf.xlu0
    %v1019 = vpop.trf.xlu0
    %v1020 = vpop.trf.xlu0
    %v1021 = vpop.trf.xlu0
    %v1022 = vpop.trf.xlu0
    %v1023 = vpop.trf.xlu0
    %v1024 = vpop.trf.xlu0
    %v1026 = vsel %vm394, %v913, 0
    %1028 = vmatpush.msra.mxu0 0.0
    %1029 = vmatpush.msra.mxu0 0.0
    %1030 = vmatpush.msra.mxu0 0.0
    %1031 = vmatpush.msra.mxu0 0.0
    %1032 = vmatpush.msra.mxu0 0.0
    %1033 = vmatpush.msra.mxu0 0.0
    %1034 = vmatpush.msra.mxu0 0.0
    %1035 = vmatpush.msra.mxu0 0.0
    %1036 = vmatpush.msra.mxu0 0.0
    %1037 = vmatpush.msra.mxu0 0.0
    %1038 = vmatpush.msra.mxu0 0.0
    %1039 = vmatpush.msra.mxu0 0.0
    %1040 = vmatpush.msra.mxu0 0.0
    %1041 = vmatpush.msra.mxu0 0.0
    %1042 = vmatpush.msra.mxu0 0.0
    %1043 = vmatpush.msra.mxu0 %v854
    %1044 = vmatmul.f32.gmra.mxu0 %v1026
    %v1045 = vpop.f32.mrf.mxu0
    %v1046 = vadd.f32 0.0, %v1045
    %1047 = vdwg.mxu0
    %v1049 = vsel %vm394, %v945, 0
    %1051 = vmatpush.msra.mxu0 0.0
    %1052 = vmatpush.msra.mxu0 0.0
    %1053 = vmatpush.msra.mxu0 0.0
    %1054 = vmatpush.msra.mxu0 0.0
    %1055 = vmatpush.msra.mxu0 0.0
    %1056 = vmatpush.msra.mxu0 0.0
    %1057 = vmatpush.msra.mxu0 0.0
    %1058 = vmatpush.msra.mxu0 0.0
    %1059 = vmatpush.msra.mxu0 0.0
    %1060 = vmatpush.msra.mxu0 0.0
    %1061 = vmatpush.msra.mxu0 0.0
    %1062 = vmatpush.msra.mxu0 0.0
    %1063 = vmatpush.msra.mxu0 0.0
    %1064 = vmatpush.msra.mxu0 0.0
    %1065 = vmatpush.msra.mxu0 0.0
    %1066 = vmatpush.msra.mxu0 %v857
    %1067 = vmatmul.f32.gmra.mxu0 %v1049
    %v1068 = vpop.f32.mrf.mxu0
    %v1069 = vadd.f32 0.0, %v1068
    %1070 = vdwg.mxu0
    %v1072 = vsel %vm394, %v977, 0
    %1074 = vmatpush.msra.mxu0 0.0
    %1075 = vmatpush.msra.mxu0 0.0
    %1076 = vmatpush.msra.mxu0 0.0
    %1077 = vmatpush.msra.mxu0 0.0
    %1078 = vmatpush.msra.mxu0 0.0
    %1079 = vmatpush.msra.mxu0 0.0
    %1080 = vmatpush.msra.mxu0 0.0
    %1081 = vmatpush.msra.mxu0 0.0
    %1082 = vmatpush.msra.mxu0 0.0
    %1083 = vmatpush.msra.mxu0 0.0
    %1084 = vmatpush.msra.mxu0 0.0
    %1085 = vmatpush.msra.mxu0 0.0
    %1086 = vmatpush.msra.mxu0 0.0
    %1087 = vmatpush.msra.mxu0 0.0
    %1088 = vmatpush.msra.mxu0 0.0
    %1089 = vmatpush.msra.mxu0 %v860
    %1090 = vmatmul.f32.gmra.mxu0 %v1072
    %v1091 = vpop.f32.mrf.mxu0
    %v1092 = vadd.f32 0.0, %v1091
    %1093 = vdwg.mxu0
    %v1095 = vsel %vm394, %v1009, 0
    %1097 = vmatpush.msra.mxu0 0.0
    %1098 = vmatpush.msra.mxu0 0.0
    %1099 = vmatpush.msra.mxu0 0.0
    %1100 = vmatpush.msra.mxu0 0.0
    %1101 = vmatpush.msra.mxu0 0.0
    %1102 = vmatpush.msra.mxu0 0.0
    %1103 = vmatpush.msra.mxu0 0.0
    %1104 = vmatpush.msra.mxu0 0.0
    %1105 = vmatpush.msra.mxu0 0.0
    %1106 = vmatpush.msra.mxu0 0.0
    %1107 = vmatpush.msra.mxu0 0.0
    %1108 = vmatpush.msra.mxu0 0.0
    %1109 = vmatpush.msra.mxu0 0.0
    %1110 = vmatpush.msra.mxu0 0.0
    %1111 = vmatpush.msra.mxu0 0.0
    %1112 = vmatpush.msra.mxu0 %v863
    %1113 = vmatmul.f32.gmra.mxu0 %v1095
    %v1114 = vpop.f32.mrf.mxu0
    %v1115 = vadd.f32 0.0, %v1114
    %1116 = vdwg.mxu0
    %v1117 = vsel %vm394, %v1046, -inf
    %1118 = vmax.xlane.f32.xlu0 %v1117
    %v1119 = vpop.xlane.xlu0 %1118
    %v1120 = vsel %vm394, %v1069, -inf
    %1121 = vmax.xlane.f32.xlu0 %v1120
    %v1122 = vpop.xlane.xlu0 %1121
    %v1123 = vsel %vm394, %v1092, -inf
    %1124 = vmax.xlane.f32.xlu0 %v1123
    %v1125 = vpop.xlane.xlu0 %1124
    %v1126 = vsel %vm394, %v1115, -inf
    %1127 = vmax.xlane.f32.xlu0 %v1126
    %v1128 = vpop.xlane.xlu0 %1127
    %v1129 = vsub.f32 %v1046, %v1119
    %v1130 = vsub.f32 %v1069, %v1122
    %v1131 = vsub.f32 %v1092, %v1125
    %v1132 = vsub.f32 %v1115, %v1128
    %v1133 = vmul.f32 %v1129, 1.442695
    %v1134 = vpow.pop %v1133
    %v1135 = vmul.f32 %v1130, 1.442695
    %v1136 = vpow.pop %v1135
    %v1137 = vmul.f32 %v1131, 1.442695
    %v1138 = vpow.pop %v1137
    %v1139 = vmul.f32 %v1132, 1.442695
    %v1140 = vpow.pop %v1139
    %v1141 = vsel %vm394, %v1134, 0.0
    %1142 = vadd.xlane.f32.xlu0 %v1141
    %v1143 = vpop.xlane.xlu0 %1142
    %v1144 = vsel %vm394, %v1136, 0.0
    %1145 = vadd.xlane.f32.xlu0 %v1144
    %v1146 = vpop.xlane.xlu0 %1145
    %v1147 = vsel %vm394, %v1138, 0.0
    %1148 = vadd.xlane.f32.xlu0 %v1147
    %v1149 = vpop.xlane.xlu0 %1148
    %v1150 = vsel %vm394, %v1140, 0.0
    %1151 = vadd.xlane.f32.xlu0 %v1150
    %v1152 = vpop.xlane.xlu0 %1151
    %v1153 = vrcp.pop %v1143
    %v1154 = vmul.f32 %v1143, %v1153
    %v1155 = vsub.f32 1.0, %v1154
    %v1156 = vmul.f32 %v1153, %v1155
    %v1157 = vadd.f32 %v1153, %v1156
    %vm1158 = vweird.f32 %v1143
    %vm1159 = vweird.f32 %v1153
    %vm1160 = vmor %vm1158, %vm1159
    %v1161 = vsel %vm1160, %v1153, %v1157
    %v1162 = vand.u32 2147483647, %v1143
    %vm1163 = vcmp.eq.f32.partialorder %v1162, 8.507059e+37
    %v1164 = vand.u32 %v1143, 2147483648
    %v1165 = vor.u32 1.1754944e-38, %v1164
    %v1166 = vsel %vm1163, %v1165, %v1161
    %v1167 = vmul.f32 %v1134, %v1166
    %v1168 = vrcp.pop %v1146
    %v1169 = vmul.f32 %v1146, %v1168
    %v1170 = vsub.f32 1.0, %v1169
    %v1171 = vmul.f32 %v1168, %v1170
    %v1172 = vadd.f32 %v1168, %v1171
    %vm1173 = vweird.f32 %v1146
    %vm1174 = vweird.f32 %v1168
    %vm1175 = vmor %vm1173, %vm1174
    %v1176 = vsel %vm1175, %v1168, %v1172
    %v1177 = vand.u32 2147483647, %v1146
    %vm1178 = vcmp.eq.f32.partialorder %v1177, 8.507059e+37
    %v1179 = vand.u32 %v1146, 2147483648
    %v1180 = vor.u32 1.1754944e-38, %v1179
    %v1181 = vsel %vm1178, %v1180, %v1176
    %v1182 = vmul.f32 %v1136, %v1181
    %v1183 = vrcp.pop %v1149
    %v1184 = vmul.f32 %v1149, %v1183
    %v1185 = vsub.f32 1.0, %v1184
    %v1186 = vmul.f32 %v1183, %v1185
    %v1187 = vadd.f32 %v1183, %v1186
    %vm1188 = vweird.f32 %v1149
    %vm1189 = vweird.f32 %v1183
    %vm1190 = vmor %vm1188, %vm1189
    %v1191 = vsel %vm1190, %v1183, %v1187
    %v1192 = vand.u32 2147483647, %v1149
    %vm1193 = vcmp.eq.f32.partialorder %v1192, 8.507059e+37
    %v1194 = vand.u32 %v1149, 2147483648
    %v1195 = vor.u32 1.1754944e-38, %v1194
    %v1196 = vsel %vm1193, %v1195, %v1191
    %v1197 = vmul.f32 %v1138, %v1196
    %v1198 = vrcp.pop %v1152
    %v1199 = vmul.f32 %v1152, %v1198
    %v1200 = vsub.f32 1.0, %v1199
    %v1201 = vmul.f32 %v1198, %v1200
    %v1202 = vadd.f32 %v1198, %v1201
    %vm1203 = vweird.f32 %v1152
    %vm1204 = vweird.f32 %v1198
    %vm1205 = vmor %vm1203, %vm1204
    %v1206 = vsel %vm1205, %v1198, %v1202
    %v1207 = vand.u32 2147483647, %v1152
    %vm1208 = vcmp.eq.f32.partialorder %v1207, 8.507059e+37
    %v1209 = vand.u32 %v1152, 2147483648
    %v1210 = vor.u32 1.1754944e-38, %v1209
    %v1211 = vsel %vm1208, %v1210, %v1206
    %v1212 = vmul.f32 %v1140, %v1211
    %s1213 = scalar_lea.vmem [#allocation2], 32
    %1214 = vst.msk [vmem:[%s1213] sm:$0xff] %vm394, %v1167
    %1215 = vst.msk [vmem:[%s1213 + $0x8] sm:$0xff] %vm394, %v1182
    %1216 = vst.msk [vmem:[%s1213 + $0x10] sm:$0xff] %vm394, %v1197
    %1217 = vst.msk [vmem:[%s1213 + $0x18] sm:$0xff] %vm394, %v1212
    %v1219 = vsel %vm394, %v1167, 0
    %v1222 = vsel %vm394, %v886, 0
    %1224 = vmatpush.xpose.msra.mxu0 0.0
    %1225 = vmatpush.xpose.msra.mxu0 0.0
    %1226 = vmatpush.xpose.msra.mxu0 0.0
    %1227 = vmatpush.xpose.msra.mxu0 0.0
    %1228 = vmatpush.xpose.msra.mxu0 0.0
    %1229 = vmatpush.xpose.msra.mxu0 0.0
    %1230 = vmatpush.xpose.msra.mxu0 0.0
    %1231 = vmatpush.xpose.msra.mxu0 0.0
    %1232 = vmatpush.xpose.msra.mxu0 0.0
    %1233 = vmatpush.xpose.msra.mxu0 0.0
    %1234 = vmatpush.xpose.msra.mxu0 0.0
    %1235 = vmatpush.xpose.msra.mxu0 0.0
    %1236 = vmatpush.xpose.msra.mxu0 0.0
    %1237 = vmatpush.xpose.msra.mxu0 0.0
    %1238 = vmatpush.xpose.msra.mxu0 0.0
    %1239 = vmatpush.xpose.msra.mxu0 %v1222
    %1240 = vmatmul.f32.gmra.mxu0 %v1219
    %v1241 = vpop.f32.mrf.mxu0
    %v1242 = vadd.f32 0.0, %v1241
    %1243 = vdwg.mxu0
    %v1245 = vsel %vm394, %v1182, 0
    %v1248 = vsel %vm394, %v889, 0
    %1250 = vmatpush.xpose.msra.mxu0 0.0
    %1251 = vmatpush.xpose.msra.mxu0 0.0
    %1252 = vmatpush.xpose.msra.mxu0 0.0
    %1253 = vmatpush.xpose.msra.mxu0 0.0
    %1254 = vmatpush.xpose.msra.mxu0 0.0
    %1255 = vmatpush.xpose.msra.mxu0 0.0
    %1256 = vmatpush.xpose.msra.mxu0 0.0
    %1257 = vmatpush.xpose.msra.mxu0 0.0
    %1258 = vmatpush.xpose.msra.mxu0 0.0
    %1259 = vmatpush.xpose.msra.mxu0 0.0
    %1260 = vmatpush.xpose.msra.mxu0 0.0
    %1261 = vmatpush.xpose.msra.mxu0 0.0
    %1262 = vmatpush.xpose.msra.mxu0 0.0
    %1263 = vmatpush.xpose.msra.mxu0 0.0
    %1264 = vmatpush.xpose.msra.mxu0 0.0
    %1265 = vmatpush.xpose.msra.mxu0 %v1248
    %1266 = vmatmul.f32.gmra.mxu0 %v1245
    %v1267 = vpop.f32.mrf.mxu0
    %v1268 = vadd.f32 0.0, %v1267
    %1269 = vdwg.mxu0
    %v1271 = vsel %vm394, %v1197, 0
    %v1274 = vsel %vm394, %v892, 0
    %1276 = vmatpush.xpose.msra.mxu0 0.0
    %1277 = vmatpush.xpose.msra.mxu0 0.0
    %1278 = vmatpush.xpose.msra.mxu0 0.0
    %1279 = vmatpush.xpose.msra.mxu0 0.0
    %1280 = vmatpush.xpose.msra.mxu0 0.0
    %1281 = vmatpush.xpose.msra.mxu0 0.0
    %1282 = vmatpush.xpose.msra.mxu0 0.0
    %1283 = vmatpush.xpose.msra.mxu0 0.0
    %1284 = vmatpush.xpose.msra.mxu0 0.0
    %1285 = vmatpush.xpose.msra.mxu0 0.0
    %1286 = vmatpush.xpose.msra.mxu0 0.0
    %1287 = vmatpush.xpose.msra.mxu0 0.0
    %1288 = vmatpush.xpose.msra.mxu0 0.0
    %1289 = vmatpush.xpose.msra.mxu0 0.0
    %1290 = vmatpush.xpose.msra.mxu0 0.0
    %1291 = vmatpush.xpose.msra.mxu0 %v1274
    %1292 = vmatmul.f32.gmra.mxu0 %v1271
    %v1293 = vpop.f32.mrf.mxu0
    %v1294 = vadd.f32 0.0, %v1293
    %1295 = vdwg.mxu0
    %v1297 = vsel %vm394, %v1212, 0
    %v1300 = vsel %vm394, %v895, 0
    %1302 = vmatpush.xpose.msra.mxu0 0.0
    %1303 = vmatpush.xpose.msra.mxu0 0.0
    %1304 = vmatpush.xpose.msra.mxu0 0.0
    %1305 = vmatpush.xpose.msra.mxu0 0.0
    %1306 = vmatpush.xpose.msra.mxu0 0.0
    %1307 = vmatpush.xpose.msra.mxu0 0.0
    %1308 = vmatpush.xpose.msra.mxu0 0.0
    %1309 = vmatpush.xpose.msra.mxu0 0.0
    %1310 = vmatpush.xpose.msra.mxu0 0.0
    %1311 = vmatpush.xpose.msra.mxu0 0.0
    %1312 = vmatpush.xpose.msra.mxu0 0.0
    %1313 = vmatpush.xpose.msra.mxu0 0.0
    %1314 = vmatpush.xpose.msra.mxu0 0.0
    %1315 = vmatpush.xpose.msra.mxu0 0.0
    %1316 = vmatpush.xpose.msra.mxu0 0.0
    %1317 = vmatpush.xpose.msra.mxu0 %v1300
    %1318 = vmatmul.f32.gmra.mxu0 %v1297
    %v1319 = vpop.f32.mrf.mxu0
    %v1320 = vadd.f32 0.0, %v1319
    %1321 = vdwg.mxu0
    %v1323 = vsel %vm394, %v1242, 0
    %1325 = vmatpush.msra.mxu0 0.0
    %1326 = vmatpush.msra.mxu0 0.0
    %1327 = vmatpush.msra.mxu0 0.0
    %1328 = vmatpush.msra.mxu0 0.0
    %1329 = vmatpush.msra.mxu0 0.0
    %1330 = vmatpush.msra.mxu0 0.0
    %1331 = vmatpush.msra.mxu0 0.0
    %1332 = vmatpush.msra.mxu0 0.0
    %1333 = vmatpush.msra.mxu0 0.0
    %1334 = vmatpush.msra.mxu0 0.0
    %1335 = vmatpush.msra.mxu0 0.0
    %1336 = vmatpush.msra.mxu0 0.0
    %1337 = vmatpush.msra.mxu0 0.0
    %1338 = vmatpush.msra.mxu0 0.0
    %1339 = vmatpush.msra.mxu0 0.0
    %1340 = vmatpush.msra.mxu0 %v53
    %1341 = vmatmul.f32.gmra.mxu0 %v1323
    %v1342 = vpop.f32.mrf.mxu0
    %v1343 = vadd.f32 0.0, %v1342
    %1344 = vdwg.mxu0
    %v1346 = vsel %vm394, %v1268, 0
    %1348 = vmatpush.msra.mxu0 0.0
    %1349 = vmatpush.msra.mxu0 0.0
    %1350 = vmatpush.msra.mxu0 0.0
    %1351 = vmatpush.msra.mxu0 0.0
    %1352 = vmatpush.msra.mxu0 0.0
    %1353 = vmatpush.msra.mxu0 0.0
    %1354 = vmatpush.msra.mxu0 0.0
    %1355 = vmatpush.msra.mxu0 0.0
    %1356 = vmatpush.msra.mxu0 0.0
    %1357 = vmatpush.msra.mxu0 0.0
    %1358 = vmatpush.msra.mxu0 0.0
    %1359 = vmatpush.msra.mxu0 0.0
    %1360 = vmatpush.msra.mxu0 0.0
    %1361 = vmatpush.msra.mxu0 0.0
    %1362 = vmatpush.msra.mxu0 0.0
    %1363 = vmatpush.msra.mxu0 %v54
    %1364 = vmatmul.f32.gmra.mxu0 %v1346
    %v1365 = vpop.f32.mrf.mxu0
    %v1366 = vadd.f32 0.0, %v1365
    %1367 = vdwg.mxu0
    %v1369 = vsel %vm394, %v1294, 0
    %1371 = vmatpush.msra.mxu0 0.0
    %1372 = vmatpush.msra.mxu0 0.0
    %1373 = vmatpush.msra.mxu0 0.0
    %1374 = vmatpush.msra.mxu0 0.0
    %1375 = vmatpush.msra.mxu0 0.0
    %1376 = vmatpush.msra.mxu0 0.0
    %1377 = vmatpush.msra.mxu0 0.0
    %1378 = vmatpush.msra.mxu0 0.0
    %1379 = vmatpush.msra.mxu0 0.0
    %1380 = vmatpush.msra.mxu0 0.0
    %1381 = vmatpush.msra.mxu0 0.0
    %1382 = vmatpush.msra.mxu0 0.0
    %1383 = vmatpush.msra.mxu0 0.0
    %1384 = vmatpush.msra.mxu0 0.0
    %1385 = vmatpush.msra.mxu0 0.0
    %1386 = vmatpush.msra.mxu0 %v55
    %1387 = vmatmul.f32.gmra.mxu0 %v1369
    %v1388 = vpop.f32.mrf.mxu0
    %v1389 = vadd.f32 0.0, %v1388
    %1390 = vdwg.mxu0
    %v1392 = vsel %vm394, %v1320, 0
    %1394 = vmatpush.msra.mxu0 0.0
    %1395 = vmatpush.msra.mxu0 0.0
    %1396 = vmatpush.msra.mxu0 0.0
    %1397 = vmatpush.msra.mxu0 0.0
    %1398 = vmatpush.msra.mxu0 0.0
    %1399 = vmatpush.msra.mxu0 0.0
    %1400 = vmatpush.msra.mxu0 0.0
    %1401 = vmatpush.msra.mxu0 0.0
    %1402 = vmatpush.msra.mxu0 0.0
    %1403 = vmatpush.msra.mxu0 0.0
    %1404 = vmatpush.msra.mxu0 0.0
    %1405 = vmatpush.msra.mxu0 0.0
    %1406 = vmatpush.msra.mxu0 0.0
    %1407 = vmatpush.msra.mxu0 0.0
    %1408 = vmatpush.msra.mxu0 0.0
    %1409 = vmatpush.msra.mxu0 %v56
    %1410 = vmatmul.f32.gmra.mxu0 %v1392
    %v1411 = vpop.f32.mrf.mxu0
    %v1412 = vadd.f32 0.0, %v1411
    %1413 = vdwg.mxu0
    %v1414 = vsel %vm93, %v1343, 0.0
    %v1415 = vsel %vm93, %v1366, 0.0
    %v1416 = vadd.f32 %v1414, %v1415
    %v1417 = vsel %vm93, %v1389, 0.0
    %v1418 = vadd.f32 %v1416, %v1417
    %v1419 = vsel %vm93, %v1412, 0.0
    %v1420 = vadd.f32 %v1418, %v1419
    %v1421 = vadd.f32 %v1420, %v791
    %s1422 = scalar_lea.vmem %s11, 8
    %1423 = vst.msk [vmem:[%s1422] sm:$0xff] %vm93, %v1421
    // Predicated region
    $region46: #{multihead_atten.1} parent=1 // pred_check
      _
    $region47: #{multihead_atten.1} parent=1 // pred_check_branch
      %1425 = sbr.rel (0) target = $region49
    $region48: #{multihead_atten.1} parent=1 // pred_region
      _
    $region49: #{multihead_atten.1} parent=1 // pred_fallthru
      _
    // Predicated region
    $region50: #{multihead_atten.1} parent=1 // pred_check
      _
    $region51: #{multihead_atten.1} parent=1 // pred_check_branch
      %1427 = sbr.rel (0) target = $region53
    $region52: #{multihead_atten.1} parent=1 // pred_region
      %1429 = vsyncadd [#allocation3], 0
      %s1430 = sshll.u32 [#allocation2], 4
      %s1431 = int_to_ptr.vmem [resolvable:$true] %s1430
      %s1432 = sshll.u32 %s12, 4
      %s1433 = int_to_ptr.hbm [resolvable:$true] %s1432
      %1438 = dma.vmem_to_hbm [thread:$0]  %s1431, 1024, %s1433, [#allocation3], 128, 128, 8
    $region53: #{multihead_atten.1} parent=1 // pred_fallthru
      _
    // Predicated region
    $region54: #{multihead_atten.1} parent=1 // pred_check
      _
    $region55: #{multihead_atten.1} parent=1 // pred_check_branch
      %1440 = sbr.rel (0) target = $region57
    $region56: #{multihead_atten.1} parent=1 // pred_region
      _
    $region57: #{multihead_atten.1} parent=1 // pred_fallthru
      _
    // Predicated region
    $region58: #{multihead_atten.1} parent=1 // pred_check
      _
    $region59: #{multihead_atten.1} parent=1 // pred_check_branch
      %1442 = sbr.rel (0) target = $region61
    $region60: #{multihead_atten.1} parent=1 // pred_region
      %1444 = dma.done [#allocation3], 1024
    $region61: #{multihead_atten.1} parent=1 // pred_fallthru
      _
    %1445 = vsyncpa [#allocation3], 1

</llo_original>
